<compile_context>
chip_gen: v7x
topology: tpu7x:2x2x1
jax: 0.10.0
libtpu: 0.0.40
codegen_flags: <defaults>
</compile_context>

<pallas_src>
import math
import functools

import jax
import jax.numpy as jnp
import numpy as np
from jax.experimental import pallas as pl
from jax.experimental.pallas import tpu as pltpu


def cross_attention_kernel(x_ref, y_ref,
                           wq_ref, bq_ref,
                           wk_ref, bk_ref,
                           wv_ref, bv_ref,
                           wo_ref, bo_ref,
                           o_ref,
                           *, n_heads: int):
    """One grid step == (one batch element, one query tile).

    Weight refs are head-major (prepared in the wrapper):
      wq_ref: (H, d_embed, d_head)   bq_ref: (H, 1, d_head)   (1/sqrt(d) folded)
      wk_ref: (H, d_cross, d_head)   bk_ref: (H, 1, d_head)
      wv_ref: (H, d_cross, d_head)   bv_ref: (H, 1, d_head)
      wo_ref: (H, d_head, d_embed)   bo_ref: (1, d_embed)
    """
    cdt = x_ref.dtype                     # matmul operand dtype (f32 or bf16)
    x = x_ref[0]                          # (tq,   d_embed)
    y = y_ref[0]                          # (S_kv, d_cross)
    d_embed = wo_ref.shape[2]

    def head_body(h, acc):
        # Per-head projections; head selected on the *leading* axis of the
        # pre-transposed weights -> no in-kernel transpose, no lane slicing.
        qh = jnp.dot(x, wq_ref[h], preferred_element_type=jnp.float32) + bq_ref[h]
        kh = jnp.dot(y, wk_ref[h], preferred_element_type=jnp.float32) + bk_ref[h]
        vh = jnp.dot(y, wv_ref[h], preferred_element_type=jnp.float32) + bv_ref[h]

        # scores = qh @ kh.T as an NT dot_general (no materialized transpose);
        # the 1/sqrt(d_head) scale is already folded into wq/bq.
        s = jax.lax.dot_general(
            qh.astype(cdt), kh.astype(cdt),
            dimension_numbers=(((1,), (1,)), ((), ())),
            preferred_element_type=jnp.float32)               # (tq, S_kv)

        # Numerically stable softmax in f32; divide -> per-row reciprocal.
        m = jnp.max(s, axis=-1, keepdims=True)
        p = jnp.exp(s - m)
        l = jnp.sum(p, axis=-1, keepdims=True)
        # approx=True (EUP) is cheaper but too coarse for the 1e-5 check below.
        p = p * pl.reciprocal(l, approx=False)

        oh = jnp.dot(p.astype(cdt), vh.astype(cdt),
                     preferred_element_type=jnp.float32)      # (tq, d_head)

        # Accumulate this head's slice of the output projection — replaces the
        # lane-axis concatenate over heads of the previous version.
        return acc + jnp.dot(oh.astype(cdt), wo_ref[h],
                             preferred_element_type=jnp.float32)

    acc0 = jnp.zeros((x.shape[0], d_embed), jnp.float32)
    acc = jax.lax.fori_loop(0, n_heads, head_body, acc0, unroll=True)
    o_ref[0] = (acc + bo_ref[...]).astype(o_ref.dtype)


def _pick_q_tile(s_q: int) -> int:
    # Biggest well-aligned tile that divides S_q; per-step overhead ~0.35us so
    # keep tiles >= 128 rows when possible (128 is the v5e sweet spot).  The
    # block-equals-full-dim fallback keeps tiny/ragged shapes legal.
    for cand in (256, 128):
        if s_q % cand == 0:
            return cand
    return s_q


def cross_attention(x, y, params, *, n_heads: int, compute_dtype=None):
    """Pallas wrapper. x: (B, S_q, d_embed), y: (B, S_kv, d_cross)."""
    B, S_q, d_embed = x.shape
    _, S_kv, d_cross = y.shape
    d_head = d_embed // n_heads
    out_dtype = x.dtype
    scale = 1.0 / math.sqrt(d_head)
    f32 = jnp.float32

    wq, bq = params["wq"], params["bq"]      # (d_embed, d_embed), (1, d_embed)
    wk, bk = params["wk"], params["bk"]      # (d_embed, d_cross), (1, d_embed)
    wv, bv = params["wv"], params["bv"]      # (d_embed, d_cross), (1, d_embed)
    wo, bo = params["wo"], params["bo"]      # (d_embed, d_embed), (1, d_embed)

    # One-time XLA-side weight preparation (outside the kernel):
    #   * transpose so the kernel consumes (in, out)-major operands directly,
    #   * fold the 1/sqrt(d_head) scale into the q projection,
    #   * split the head dimension out as the *leading* axis.
    wq3 = (wq.T.astype(f32) * scale).reshape(d_embed, n_heads, d_head).transpose(1, 0, 2)
    wk3 = wk.T.astype(f32).reshape(d_cross, n_heads, d_head).transpose(1, 0, 2)
    wv3 = wv.T.astype(f32).reshape(d_cross, n_heads, d_head).transpose(1, 0, 2)
    wo3 = wo.T.astype(f32).reshape(n_heads, d_head, d_embed)
    bq3 = (bq.astype(f32) * scale).reshape(1, n_heads, d_head).transpose(1, 0, 2)
    bk3 = bk.astype(f32).reshape(1, n_heads, d_head).transpose(1, 0, 2)
    bv3 = bv.astype(f32).reshape(1, n_heads, d_head).transpose(1, 0, 2)
    bo2 = bo.astype(f32)

    if compute_dtype is not None:
        # bf16 operands for the v6e/v7x MXU; biases, softmax and accumulation
        # stay f32 inside the kernel.
        x = x.astype(compute_dtype)
        y = y.astype(compute_dtype)
        wq3, wk3, wv3, wo3 = (w.astype(compute_dtype) for w in (wq3, wk3, wv3, wo3))

    tq = _pick_q_tile(S_q)
    grid = (B, S_q // tq)

    def _const_spec(a):
        zeros = (0,) * a.ndim
        return pl.BlockSpec(a.shape, lambda b, qi, _z=zeros: _z)

    kernel = functools.partial(cross_attention_kernel, n_heads=n_heads)

    # TODO(synk): for production shapes, pad d_embed / d_cross / S_kv up to
    # (8, 128)-friendly sizes in this wrapper for fully lane-dense loads/stores.
    return pl.pallas_call(
        kernel,
        out_shape=jax.ShapeDtypeStruct((B, S_q, d_embed), out_dtype),
        grid_spec=pltpu.PrefetchScalarGridSpec(
            num_scalar_prefetch=0,
            grid=grid,
            in_specs=[
                pl.BlockSpec((1, tq, d_embed), lambda b, qi: (b, qi, 0)),   # x tile
                pl.BlockSpec((1, S_kv, d_cross), lambda b, qi: (b, 0, 0)),  # y (kv src)
                _const_spec(wq3), _const_spec(bq3),
                _const_spec(wk3), _const_spec(bk3),
                _const_spec(wv3), _const_spec(bv3),
                _const_spec(wo3), _const_spec(bo2),
            ],
            out_specs=pl.BlockSpec((1, tq, d_embed), lambda b, qi: (b, qi, 0)),
        ),
        compiler_params=pltpu.CompilerParams(
            # Both grid axes are independent -> shardable across v7x's 2 TCs.
            dimension_semantics=("parallel", "parallel")),
    )(x, y, wq3, bq3, wk3, bk3, wv3, bv3, wo3, bo2)


def cross_attention_ref(x, y, params, *, n_heads: int):
    """Pure-JAX reference mirroring the PyTorch forward."""
    B, S_q, d_embed = x.shape
    d_head = d_embed // n_heads
    q = x @ params["wq"].T + params["bq"]
    k = y @ params["wk"].T + params["bk"]
    v = y @ params["wv"].T + params["bv"]
    q = q.reshape(B, S_q, n_heads, d_head).transpose(0, 2, 1, 3)
    k = k.reshape(B, -1, n_heads, d_head).transpose(0, 2, 1, 3)
    v = v.reshape(B, -1, n_heads, d_head).transpose(0, 2, 1, 3)
    w = (q @ k.transpose(0, 1, 3, 2)) / math.sqrt(d_head)
    w = jax.nn.softmax(w, axis=-1)
    o = (w @ v).transpose(0, 2, 1, 3).reshape(B, S_q, d_embed)
    return o @ params["wo"].T + params["bo"]


if __name__ == "__main__":
    # Small shapes consistent with the module's forward.
    B, S_q, S_kv = 2, 16, 8
    n_heads, d_embed, d_cross = 4, 32, 24

    key = jax.random.PRNGKey(0)
    ks = jax.random.split(key, 10)

    x = jax.random.normal(ks[0], (B, S_q, d_embed), dtype=jnp.float32)
    y = jax.random.normal(ks[1], (B, S_kv, d_cross), dtype=jnp.float32)

    def init_linear(kw, kb, out_f, in_f):
        # Deterministic init (roughly matches nn.Linear uniform bound).
        bound = 1.0 / math.sqrt(in_f)
        w = jax.random.uniform(kw, (out_f, in_f), jnp.float32, -bound, bound)
        b = jax.random.uniform(kb, (1, out_f), jnp.float32, -bound, bound)
        return w, b

    wq, bq = init_linear(ks[2], ks[3], d_embed, d_embed)
    wk, bk = init_linear(ks[4], ks[5], d_embed, d_cross)
    wv, bv = init_linear(ks[6], ks[7], d_embed, d_cross)
    wo, bo = init_linear(ks[8], ks[9], d_embed, d_embed)

    params = dict(wq=wq, bq=bq, wk=wk, bk=bk, wv=wv, bv=bv, wo=wo, bo=bo)

    ref = cross_attention_ref(x, y, params, n_heads=n_heads)

    # f32 path (exact semantics of the PyTorch module).
    out = jax.block_until_ready(cross_attention(x, y, params, n_heads=n_heads))
    np.testing.assert_allclose(np.asarray(out), np.asarray(ref), rtol=1e-5, atol=1e-5)

    # bf16 matmul-operand path (v6e/v7x feedback); accumulation/softmax stay f32.
    out_bf16 = jax.block_until_ready(
        cross_attention(x, y, params, n_heads=n_heads, compute_dtype=jnp.bfloat16))
    np.testing.assert_allclose(np.asarray(out_bf16), np.asarray(ref),
                               rtol=5e-2, atol=5e-2)

    print("KERNEL_OK")
</pallas_src>

<mosaic_0001>
module attributes {stable_mosaic.version = 11 : i64} {
  func.func @cross_attention_kernel(%arg0: i32, %arg1: i32, %arg2: memref<1x16x32xf32, #tpu.memory_space<vmem>>, %arg3: memref<1x8x24xf32, #tpu.memory_space<vmem>>, %arg4: memref<4x32x8xf32, #tpu.memory_space<vmem>>, %arg5: memref<4x1x8xf32, #tpu.memory_space<vmem>>, %arg6: memref<4x24x8xf32, #tpu.memory_space<vmem>>, %arg7: memref<4x1x8xf32, #tpu.memory_space<vmem>>, %arg8: memref<4x24x8xf32, #tpu.memory_space<vmem>>, %arg9: memref<4x1x8xf32, #tpu.memory_space<vmem>>, %arg10: memref<4x8x32xf32, #tpu.memory_space<vmem>>, %arg11: memref<1x32xf32, #tpu.memory_space<vmem>>, %arg12: memref<1x16x32xf32, #tpu.memory_space<vmem>>) attributes {dimension_semantics = [#tpu.dimension_semantics<parallel>, #tpu.dimension_semantics<parallel>], iteration_bounds = array<i64: 2, 1>, scalar_prefetch = 0 : i64, scratch_operands = 0 : i64, tpu.core_type = #tpu.core_type<tc>, window_params = [{transform_indices = @transform_0, window_bounds = array<i64: 1, 16, 32>}, {transform_indices = @transform_1, window_bounds = array<i64: 1, 8, 24>}, {pipeline_mode = #tpu.pipeline_mode<synchronous>, transform_indices = @transform_2, window_bounds = array<i64: 4, 32, 8>}, {pipeline_mode = #tpu.pipeline_mode<synchronous>, transform_indices = @transform_3, window_bounds = array<i64: 4, 1, 8>}, {pipeline_mode = #tpu.pipeline_mode<synchronous>, transform_indices = @transform_4, window_bounds = array<i64: 4, 24, 8>}, {pipeline_mode = #tpu.pipeline_mode<synchronous>, transform_indices = @transform_5, window_bounds = array<i64: 4, 1, 8>}, {pipeline_mode = #tpu.pipeline_mode<synchronous>, transform_indices = @transform_6, window_bounds = array<i64: 4, 24, 8>}, {pipeline_mode = #tpu.pipeline_mode<synchronous>, transform_indices = @transform_7, window_bounds = array<i64: 4, 1, 8>}, {pipeline_mode = #tpu.pipeline_mode<synchronous>, transform_indices = @transform_8, window_bounds = array<i64: 4, 8, 32>}, {pipeline_mode = #tpu.pipeline_mode<synchronous>, transform_indices = @transform_9, window_bounds = array<i64: 1, 32>}, {transform_indices = @transform_10, window_bounds = array<i64: 1, 16, 32>}]} {
    %c0 = arith.constant 0 : index
    %c0_0 = arith.constant 0 : index
    %c0_1 = arith.constant 0 : index
    %0 = vector.load %arg2[%c0, %c0_0, %c0_1] : memref<1x16x32xf32, #tpu.memory_space<vmem>>, vector<1x16x32xf32>
    %1 = vector.shape_cast %0 : vector<1x16x32xf32> to vector<16x32xf32>
    %c0_2 = arith.constant 0 : index
    %c0_3 = arith.constant 0 : index
    %c0_4 = arith.constant 0 : index
    %2 = vector.load %arg3[%c0_2, %c0_3, %c0_4] : memref<1x8x24xf32, #tpu.memory_space<vmem>>, vector<1x8x24xf32>
    %3 = vector.shape_cast %2 : vector<1x8x24xf32> to vector<8x24xf32>
    %cst = arith.constant 0.000000e+00 : f32
    %4 = vector.broadcast %cst : f32 to vector<16x32xf32>
    %c0_i32 = arith.constant 0 : i32
    %5 = arith.index_cast %c0_i32 : i32 to index
    %c0_5 = arith.constant 0 : index
    %c0_6 = arith.constant 0 : index
    %6 = vector.load %arg4[%5, %c0_5, %c0_6] : memref<4x32x8xf32, #tpu.memory_space<vmem>>, vector<1x32x8xf32>
    %7 = vector.shape_cast %6 : vector<1x32x8xf32> to vector<32x8xf32>
    %cst_7 = arith.constant dense<0.000000e+00> : vector<16x8xf32>
    %8 = tpu.matmul %1, %7, %cst_7 {dimension_numbers = #tpu.dot_dimension_numbers<[1], [0], [0], [1], [0, 0, 1, 1], [], []>} : vector<16x32xf32>, vector<32x8xf32>, vector<16x8xf32> -> vector<16x8xf32>
    %9 = arith.index_cast %c0_i32 : i32 to index
    %c0_8 = arith.constant 0 : index
    %c0_9 = arith.constant 0 : index
    %10 = vector.load %arg5[%9, %c0_8, %c0_9] : memref<4x1x8xf32, #tpu.memory_space<vmem>>, vector<1x1x8xf32>
    %11 = vector.shape_cast %10 : vector<1x1x8xf32> to vector<1x8xf32>
    %12 = vector.broadcast %11 : vector<1x8xf32> to vector<16x8xf32>
    %13 = arith.addf %8, %12 : vector<16x8xf32>
    %14 = arith.index_cast %c0_i32 : i32 to index
    %c0_10 = arith.constant 0 : index
    %c0_11 = arith.constant 0 : index
    %15 = vector.load %arg6[%14, %c0_10, %c0_11] : memref<4x24x8xf32, #tpu.memory_space<vmem>>, vector<1x24x8xf32>
    %16 = vector.shape_cast %15 : vector<1x24x8xf32> to vector<24x8xf32>
    %cst_12 = arith.constant dense<0.000000e+00> : vector<8x8xf32>
    %17 = tpu.matmul %3, %16, %cst_12 {dimension_numbers = #tpu.dot_dimension_numbers<[1], [0], [0], [1], [0, 0, 1, 1], [], []>} : vector<8x24xf32>, vector<24x8xf32>, vector<8x8xf32> -> vector<8x8xf32>
    %18 = arith.index_cast %c0_i32 : i32 to index
    %c0_13 = arith.constant 0 : index
    %c0_14 = arith.constant 0 : index
    %19 = vector.load %arg7[%18, %c0_13, %c0_14] : memref<4x1x8xf32, #tpu.memory_space<vmem>>, vector<1x1x8xf32>
    %20 = vector.shape_cast %19 : vector<1x1x8xf32> to vector<1x8xf32>
    %21 = vector.broadcast %20 : vector<1x8xf32> to vector<8x8xf32>
    %22 = arith.addf %17, %21 : vector<8x8xf32>
    %23 = arith.index_cast %c0_i32 : i32 to index
    %c0_15 = arith.constant 0 : index
    %c0_16 = arith.constant 0 : index
    %24 = vector.load %arg8[%23, %c0_15, %c0_16] : memref<4x24x8xf32, #tpu.memory_space<vmem>>, vector<1x24x8xf32>
    %25 = vector.shape_cast %24 : vector<1x24x8xf32> to vector<24x8xf32>
    %cst_17 = arith.constant dense<0.000000e+00> : vector<8x8xf32>
    %26 = tpu.matmul %3, %25, %cst_17 {dimension_numbers = #tpu.dot_dimension_numbers<[1], [0], [0], [1], [0, 0, 1, 1], [], []>} : vector<8x24xf32>, vector<24x8xf32>, vector<8x8xf32> -> vector<8x8xf32>
    %27 = arith.index_cast %c0_i32 : i32 to index
    %c0_18 = arith.constant 0 : index
    %c0_19 = arith.constant 0 : index
    %28 = vector.load %arg9[%27, %c0_18, %c0_19] : memref<4x1x8xf32, #tpu.memory_space<vmem>>, vector<1x1x8xf32>
    %29 = vector.shape_cast %28 : vector<1x1x8xf32> to vector<1x8xf32>
    %30 = vector.broadcast %29 : vector<1x8xf32> to vector<8x8xf32>
    %31 = arith.addf %26, %30 : vector<8x8xf32>
    %cst_20 = arith.constant dense<0.000000e+00> : vector<16x8xf32>
    %32 = tpu.matmul %13, %22, %cst_20 {dimension_numbers = #tpu.dot_dimension_numbers<[1], [1], [0], [0], [0, 0, 1, 0], [], []>} : vector<16x8xf32>, vector<8x8xf32>, vector<16x8xf32> -> vector<16x8xf32>
    %cst_21 = arith.constant dense<0xFF800000> : vector<16xf32>
    %33 = vector.multi_reduction <maximumf>, %32, %cst_21 [1] : vector<16x8xf32> to vector<16xf32>
    %34 = vector.shape_cast %33 : vector<16xf32> to vector<16x1xf32>
    %35 = vector.broadcast %34 : vector<16x1xf32> to vector<16x8xf32>
    %36 = arith.subf %32, %35 : vector<16x8xf32>
    %37 = math.exp %36 : vector<16x8xf32>
    %cst_22 = arith.constant dense<0.000000e+00> : vector<16xf32>
    %38 = vector.multi_reduction <add>, %37, %cst_22 [1] : vector<16x8xf32> to vector<16xf32>
    %39 = vector.shape_cast %38 : vector<16xf32> to vector<16x1xf32>
    %40 = tpu.reciprocal %39 : vector<16x1xf32> -> vector<16x1xf32>
    %41 = vector.broadcast %40 : vector<16x1xf32> to vector<16x8xf32>
    %42 = arith.mulf %37, %41 : vector<16x8xf32>
    %cst_23 = arith.constant dense<0.000000e+00> : vector<16x8xf32>
    %43 = tpu.matmul %42, %31, %cst_23 {dimension_numbers = #tpu.dot_dimension_numbers<[1], [0], [0], [1], [0, 0, 1, 1], [], []>} : vector<16x8xf32>, vector<8x8xf32>, vector<16x8xf32> -> vector<16x8xf32>
    %44 = arith.index_cast %c0_i32 : i32 to index
    %c0_24 = arith.constant 0 : index
    %c0_25 = arith.constant 0 : index
    %45 = vector.load %arg10[%44, %c0_24, %c0_25] : memref<4x8x32xf32, #tpu.memory_space<vmem>>, vector<1x8x32xf32>
    %46 = vector.shape_cast %45 : vector<1x8x32xf32> to vector<8x32xf32>
    %cst_26 = arith.constant dense<0.000000e+00> : vector<16x32xf32>
    %47 = tpu.matmul %43, %46, %cst_26 {dimension_numbers = #tpu.dot_dimension_numbers<[1], [0], [0], [1], [0, 0, 1, 1], [], []>} : vector<16x8xf32>, vector<8x32xf32>, vector<16x32xf32> -> vector<16x32xf32>
    %48 = arith.addf %4, %47 : vector<16x32xf32>
    %c1_i32 = arith.constant 1 : i32
    %49 = arith.index_cast %c1_i32 : i32 to index
    %c0_27 = arith.constant 0 : index
    %c0_28 = arith.constant 0 : index
    %50 = vector.load %arg4[%49, %c0_27, %c0_28] : memref<4x32x8xf32, #tpu.memory_space<vmem>>, vector<1x32x8xf32>
    %51 = vector.shape_cast %50 : vector<1x32x8xf32> to vector<32x8xf32>
    %cst_29 = arith.constant dense<0.000000e+00> : vector<16x8xf32>
    %52 = tpu.matmul %1, %51, %cst_29 {dimension_numbers = #tpu.dot_dimension_numbers<[1], [0], [0], [1], [0, 0, 1, 1], [], []>} : vector<16x32xf32>, vector<32x8xf32>, vector<16x8xf32> -> vector<16x8xf32>
    %53 = arith.index_cast %c1_i32 : i32 to index
    %c0_30 = arith.constant 0 : index
    %c0_31 = arith.constant 0 : index
    %54 = vector.load %arg5[%53, %c0_30, %c0_31] : memref<4x1x8xf32, #tpu.memory_space<vmem>>, vector<1x1x8xf32>
    %55 = vector.shape_cast %54 : vector<1x1x8xf32> to vector<1x8xf32>
    %56 = vector.broadcast %55 : vector<1x8xf32> to vector<16x8xf32>
    %57 = arith.addf %52, %56 : vector<16x8xf32>
    %58 = arith.index_cast %c1_i32 : i32 to index
    %c0_32 = arith.constant 0 : index
    %c0_33 = arith.constant 0 : index
    %59 = vector.load %arg6[%58, %c0_32, %c0_33] : memref<4x24x8xf32, #tpu.memory_space<vmem>>, vector<1x24x8xf32>
    %60 = vector.shape_cast %59 : vector<1x24x8xf32> to vector<24x8xf32>
    %cst_34 = arith.constant dense<0.000000e+00> : vector<8x8xf32>
    %61 = tpu.matmul %3, %60, %cst_34 {dimension_numbers = #tpu.dot_dimension_numbers<[1], [0], [0], [1], [0, 0, 1, 1], [], []>} : vector<8x24xf32>, vector<24x8xf32>, vector<8x8xf32> -> vector<8x8xf32>
    %62 = arith.index_cast %c1_i32 : i32 to index
    %c0_35 = arith.constant 0 : index
    %c0_36 = arith.constant 0 : index
    %63 = vector.load %arg7[%62, %c0_35, %c0_36] : memref<4x1x8xf32, #tpu.memory_space<vmem>>, vector<1x1x8xf32>
    %64 = vector.shape_cast %63 : vector<1x1x8xf32> to vector<1x8xf32>
    %65 = vector.broadcast %64 : vector<1x8xf32> to vector<8x8xf32>
    %66 = arith.addf %61, %65 : vector<8x8xf32>
    %67 = arith.index_cast %c1_i32 : i32 to index
    %c0_37 = arith.constant 0 : index
    %c0_38 = arith.constant 0 : index
    %68 = vector.load %arg8[%67, %c0_37, %c0_38] : memref<4x24x8xf32, #tpu.memory_space<vmem>>, vector<1x24x8xf32>
    %69 = vector.shape_cast %68 : vector<1x24x8xf32> to vector<24x8xf32>
    %cst_39 = arith.constant dense<0.000000e+00> : vector<8x8xf32>
    %70 = tpu.matmul %3, %69, %cst_39 {dimension_numbers = #tpu.dot_dimension_numbers<[1], [0], [0], [1], [0, 0, 1, 1], [], []>} : vector<8x24xf32>, vector<24x8xf32>, vector<8x8xf32> -> vector<8x8xf32>
    %71 = arith.index_cast %c1_i32 : i32 to index
    %c0_40 = arith.constant 0 : index
    %c0_41 = arith.constant 0 : index
    %72 = vector.load %arg9[%71, %c0_40, %c0_41] : memref<4x1x8xf32, #tpu.memory_space<vmem>>, vector<1x1x8xf32>
    %73 = vector.shape_cast %72 : vector<1x1x8xf32> to vector<1x8xf32>
    %74 = vector.broadcast %73 : vector<1x8xf32> to vector<8x8xf32>
    %75 = arith.addf %70, %74 : vector<8x8xf32>
    %cst_42 = arith.constant dense<0.000000e+00> : vector<16x8xf32>
    %76 = tpu.matmul %57, %66, %cst_42 {dimension_numbers = #tpu.dot_dimension_numbers<[1], [1], [0], [0], [0, 0, 1, 0], [], []>} : vector<16x8xf32>, vector<8x8xf32>, vector<16x8xf32> -> vector<16x8xf32>
    %cst_43 = arith.constant dense<0xFF800000> : vector<16xf32>
    %77 = vector.multi_reduction <maximumf>, %76, %cst_43 [1] : vector<16x8xf32> to vector<16xf32>
    %78 = vector.shape_cast %77 : vector<16xf32> to vector<16x1xf32>
    %79 = vector.broadcast %78 : vector<16x1xf32> to vector<16x8xf32>
    %80 = arith.subf %76, %79 : vector<16x8xf32>
    %81 = math.exp %80 : vector<16x8xf32>
    %cst_44 = arith.constant dense<0.000000e+00> : vector<16xf32>
    %82 = vector.multi_reduction <add>, %81, %cst_44 [1] : vector<16x8xf32> to vector<16xf32>
    %83 = vector.shape_cast %82 : vector<16xf32> to vector<16x1xf32>
    %84 = tpu.reciprocal %83 : vector<16x1xf32> -> vector<16x1xf32>
    %85 = vector.broadcast %84 : vector<16x1xf32> to vector<16x8xf32>
    %86 = arith.mulf %81, %85 : vector<16x8xf32>
    %cst_45 = arith.constant dense<0.000000e+00> : vector<16x8xf32>
    %87 = tpu.matmul %86, %75, %cst_45 {dimension_numbers = #tpu.dot_dimension_numbers<[1], [0], [0], [1], [0, 0, 1, 1], [], []>} : vector<16x8xf32>, vector<8x8xf32>, vector<16x8xf32> -> vector<16x8xf32>
    %88 = arith.index_cast %c1_i32 : i32 to index
    %c0_46 = arith.constant 0 : index
    %c0_47 = arith.constant 0 : index
    %89 = vector.load %arg10[%88, %c0_46, %c0_47] : memref<4x8x32xf32, #tpu.memory_space<vmem>>, vector<1x8x32xf32>
    %90 = vector.shape_cast %89 : vector<1x8x32xf32> to vector<8x32xf32>
    %cst_48 = arith.constant dense<0.000000e+00> : vector<16x32xf32>
    %91 = tpu.matmul %87, %90, %cst_48 {dimension_numbers = #tpu.dot_dimension_numbers<[1], [0], [0], [1], [0, 0, 1, 1], [], []>} : vector<16x8xf32>, vector<8x32xf32>, vector<16x32xf32> -> vector<16x32xf32>
    %92 = arith.addf %48, %91 : vector<16x32xf32>
    %c2_i32 = arith.constant 2 : i32
    %93 = arith.index_cast %c2_i32 : i32 to index
    %c0_49 = arith.constant 0 : index
    %c0_50 = arith.constant 0 : index
    %94 = vector.load %arg4[%93, %c0_49, %c0_50] : memref<4x32x8xf32, #tpu.memory_space<vmem>>, vector<1x32x8xf32>
    %95 = vector.shape_cast %94 : vector<1x32x8xf32> to vector<32x8xf32>
    %cst_51 = arith.constant dense<0.000000e+00> : vector<16x8xf32>
    %96 = tpu.matmul %1, %95, %cst_51 {dimension_numbers = #tpu.dot_dimension_numbers<[1], [0], [0], [1], [0, 0, 1, 1], [], []>} : vector<16x32xf32>, vector<32x8xf32>, vector<16x8xf32> -> vector<16x8xf32>
    %97 = arith.index_cast %c2_i32 : i32 to index
    %c0_52 = arith.constant 0 : index
    %c0_53 = arith.constant 0 : index
    %98 = vector.load %arg5[%97, %c0_52, %c0_53] : memref<4x1x8xf32, #tpu.memory_space<vmem>>, vector<1x1x8xf32>
    %99 = vector.shape_cast %98 : vector<1x1x8xf32> to vector<1x8xf32>
    %100 = vector.broadcast %99 : vector<1x8xf32> to vector<16x8xf32>
    %101 = arith.addf %96, %100 : vector<16x8xf32>
    %102 = arith.index_cast %c2_i32 : i32 to index
    %c0_54 = arith.constant 0 : index
    %c0_55 = arith.constant 0 : index
    %103 = vector.load %arg6[%102, %c0_54, %c0_55] : memref<4x24x8xf32, #tpu.memory_space<vmem>>, vector<1x24x8xf32>
    %104 = vector.shape_cast %103 : vector<1x24x8xf32> to vector<24x8xf32>
    %cst_56 = arith.constant dense<0.000000e+00> : vector<8x8xf32>
    %105 = tpu.matmul %3, %104, %cst_56 {dimension_numbers = #tpu.dot_dimension_numbers<[1], [0], [0], [1], [0, 0, 1, 1], [], []>} : vector<8x24xf32>, vector<24x8xf32>, vector<8x8xf32> -> vector<8x8xf32>
    %106 = arith.index_cast %c2_i32 : i32 to index
    %c0_57 = arith.constant 0 : index
    %c0_58 = arith.constant 0 : index
    %107 = vector.load %arg7[%106, %c0_57, %c0_58] : memref<4x1x8xf32, #tpu.memory_space<vmem>>, vector<1x1x8xf32>
    %108 = vector.shape_cast %107 : vector<1x1x8xf32> to vector<1x8xf32>
    %109 = vector.broadcast %108 : vector<1x8xf32> to vector<8x8xf32>
    %110 = arith.addf %105, %109 : vector<8x8xf32>
    %111 = arith.index_cast %c2_i32 : i32 to index
    %c0_59 = arith.constant 0 : index
    %c0_60 = arith.constant 0 : index
    %112 = vector.load %arg8[%111, %c0_59, %c0_60] : memref<4x24x8xf32, #tpu.memory_space<vmem>>, vector<1x24x8xf32>
    %113 = vector.shape_cast %112 : vector<1x24x8xf32> to vector<24x8xf32>
    %cst_61 = arith.constant dense<0.000000e+00> : vector<8x8xf32>
    %114 = tpu.matmul %3, %113, %cst_61 {dimension_numbers = #tpu.dot_dimension_numbers<[1], [0], [0], [1], [0, 0, 1, 1], [], []>} : vector<8x24xf32>, vector<24x8xf32>, vector<8x8xf32> -> vector<8x8xf32>
    %115 = arith.index_cast %c2_i32 : i32 to index
    %c0_62 = arith.constant 0 : index
    %c0_63 = arith.constant 0 : index
    %116 = vector.load %arg9[%115, %c0_62, %c0_63] : memref<4x1x8xf32, #tpu.memory_space<vmem>>, vector<1x1x8xf32>
    %117 = vector.shape_cast %116 : vector<1x1x8xf32> to vector<1x8xf32>
    %118 = vector.broadcast %117 : vector<1x8xf32> to vector<8x8xf32>
    %119 = arith.addf %114, %118 : vector<8x8xf32>
    %cst_64 = arith.constant dense<0.000000e+00> : vector<16x8xf32>
    %120 = tpu.matmul %101, %110, %cst_64 {dimension_numbers = #tpu.dot_dimension_numbers<[1], [1], [0], [0], [0, 0, 1, 0], [], []>} : vector<16x8xf32>, vector<8x8xf32>, vector<16x8xf32> -> vector<16x8xf32>
    %cst_65 = arith.constant dense<0xFF800000> : vector<16xf32>
    %121 = vector.multi_reduction <maximumf>, %120, %cst_65 [1] : vector<16x8xf32> to vector<16xf32>
    %122 = vector.shape_cast %121 : vector<16xf32> to vector<16x1xf32>
    %123 = vector.broadcast %122 : vector<16x1xf32> to vector<16x8xf32>
    %124 = arith.subf %120, %123 : vector<16x8xf32>
    %125 = math.exp %124 : vector<16x8xf32>
    %cst_66 = arith.constant dense<0.000000e+00> : vector<16xf32>
    %126 = vector.multi_reduction <add>, %125, %cst_66 [1] : vector<16x8xf32> to vector<16xf32>
    %127 = vector.shape_cast %126 : vector<16xf32> to vector<16x1xf32>
    %128 = tpu.reciprocal %127 : vector<16x1xf32> -> vector<16x1xf32>
    %129 = vector.broadcast %128 : vector<16x1xf32> to vector<16x8xf32>
    %130 = arith.mulf %125, %129 : vector<16x8xf32>
    %cst_67 = arith.constant dense<0.000000e+00> : vector<16x8xf32>
    %131 = tpu.matmul %130, %119, %cst_67 {dimension_numbers = #tpu.dot_dimension_numbers<[1], [0], [0], [1], [0, 0, 1, 1], [], []>} : vector<16x8xf32>, vector<8x8xf32>, vector<16x8xf32> -> vector<16x8xf32>
    %132 = arith.index_cast %c2_i32 : i32 to index
    %c0_68 = arith.constant 0 : index
    %c0_69 = arith.constant 0 : index
    %133 = vector.load %arg10[%132, %c0_68, %c0_69] : memref<4x8x32xf32, #tpu.memory_space<vmem>>, vector<1x8x32xf32>
    %134 = vector.shape_cast %133 : vector<1x8x32xf32> to vector<8x32xf32>
    %cst_70 = arith.constant dense<0.000000e+00> : vector<16x32xf32>
    %135 = tpu.matmul %131, %134, %cst_70 {dimension_numbers = #tpu.dot_dimension_numbers<[1], [0], [0], [1], [0, 0, 1, 1], [], []>} : vector<16x8xf32>, vector<8x32xf32>, vector<16x32xf32> -> vector<16x32xf32>
    %136 = arith.addf %92, %135 : vector<16x32xf32>
    %c3_i32 = arith.constant 3 : i32
    %137 = arith.index_cast %c3_i32 : i32 to index
    %c0_71 = arith.constant 0 : index
    %c0_72 = arith.constant 0 : index
    %138 = vector.load %arg4[%137, %c0_71, %c0_72] : memref<4x32x8xf32, #tpu.memory_space<vmem>>, vector<1x32x8xf32>
    %139 = vector.shape_cast %138 : vector<1x32x8xf32> to vector<32x8xf32>
    %cst_73 = arith.constant dense<0.000000e+00> : vector<16x8xf32>
    %140 = tpu.matmul %1, %139, %cst_73 {dimension_numbers = #tpu.dot_dimension_numbers<[1], [0], [0], [1], [0, 0, 1, 1], [], []>} : vector<16x32xf32>, vector<32x8xf32>, vector<16x8xf32> -> vector<16x8xf32>
    %141 = arith.index_cast %c3_i32 : i32 to index
    %c0_74 = arith.constant 0 : index
    %c0_75 = arith.constant 0 : index
    %142 = vector.load %arg5[%141, %c0_74, %c0_75] : memref<4x1x8xf32, #tpu.memory_space<vmem>>, vector<1x1x8xf32>
    %143 = vector.shape_cast %142 : vector<1x1x8xf32> to vector<1x8xf32>
    %144 = vector.broadcast %143 : vector<1x8xf32> to vector<16x8xf32>
    %145 = arith.addf %140, %144 : vector<16x8xf32>
    %146 = arith.index_cast %c3_i32 : i32 to index
    %c0_76 = arith.constant 0 : index
    %c0_77 = arith.constant 0 : index
    %147 = vector.load %arg6[%146, %c0_76, %c0_77] : memref<4x24x8xf32, #tpu.memory_space<vmem>>, vector<1x24x8xf32>
    %148 = vector.shape_cast %147 : vector<1x24x8xf32> to vector<24x8xf32>
    %cst_78 = arith.constant dense<0.000000e+00> : vector<8x8xf32>
    %149 = tpu.matmul %3, %148, %cst_78 {dimension_numbers = #tpu.dot_dimension_numbers<[1], [0], [0], [1], [0, 0, 1, 1], [], []>} : vector<8x24xf32>, vector<24x8xf32>, vector<8x8xf32> -> vector<8x8xf32>
    %150 = arith.index_cast %c3_i32 : i32 to index
    %c0_79 = arith.constant 0 : index
    %c0_80 = arith.constant 0 : index
    %151 = vector.load %arg7[%150, %c0_79, %c0_80] : memref<4x1x8xf32, #tpu.memory_space<vmem>>, vector<1x1x8xf32>
    %152 = vector.shape_cast %151 : vector<1x1x8xf32> to vector<1x8xf32>
    %153 = vector.broadcast %152 : vector<1x8xf32> to vector<8x8xf32>
    %154 = arith.addf %149, %153 : vector<8x8xf32>
    %155 = arith.index_cast %c3_i32 : i32 to index
    %c0_81 = arith.constant 0 : index
    %c0_82 = arith.constant 0 : index
    %156 = vector.load %arg8[%155, %c0_81, %c0_82] : memref<4x24x8xf32, #tpu.memory_space<vmem>>, vector<1x24x8xf32>
    %157 = vector.shape_cast %156 : vector<1x24x8xf32> to vector<24x8xf32>
    %cst_83 = arith.constant dense<0.000000e+00> : vector<8x8xf32>
    %158 = tpu.matmul %3, %157, %cst_83 {dimension_numbers = #tpu.dot_dimension_numbers<[1], [0], [0], [1], [0, 0, 1, 1], [], []>} : vector<8x24xf32>, vector<24x8xf32>, vector<8x8xf32> -> vector<8x8xf32>
    %159 = arith.index_cast %c3_i32 : i32 to index
    %c0_84 = arith.constant 0 : index
    %c0_85 = arith.constant 0 : index
    %160 = vector.load %arg9[%159, %c0_84, %c0_85] : memref<4x1x8xf32, #tpu.memory_space<vmem>>, vector<1x1x8xf32>
    %161 = vector.shape_cast %160 : vector<1x1x8xf32> to vector<1x8xf32>
    %162 = vector.broadcast %161 : vector<1x8xf32> to vector<8x8xf32>
    %163 = arith.addf %158, %162 : vector<8x8xf32>
    %cst_86 = arith.constant dense<0.000000e+00> : vector<16x8xf32>
    %164 = tpu.matmul %145, %154, %cst_86 {dimension_numbers = #tpu.dot_dimension_numbers<[1], [1], [0], [0], [0, 0, 1, 0], [], []>} : vector<16x8xf32>, vector<8x8xf32>, vector<16x8xf32> -> vector<16x8xf32>
    %cst_87 = arith.constant dense<0xFF800000> : vector<16xf32>
    %165 = vector.multi_reduction <maximumf>, %164, %cst_87 [1] : vector<16x8xf32> to vector<16xf32>
    %166 = vector.shape_cast %165 : vector<16xf32> to vector<16x1xf32>
    %167 = vector.broadcast %166 : vector<16x1xf32> to vector<16x8xf32>
    %168 = arith.subf %164, %167 : vector<16x8xf32>
    %169 = math.exp %168 : vector<16x8xf32>
    %cst_88 = arith.constant dense<0.000000e+00> : vector<16xf32>
    %170 = vector.multi_reduction <add>, %169, %cst_88 [1] : vector<16x8xf32> to vector<16xf32>
    %171 = vector.shape_cast %170 : vector<16xf32> to vector<16x1xf32>
    %172 = tpu.reciprocal %171 : vector<16x1xf32> -> vector<16x1xf32>
    %173 = vector.broadcast %172 : vector<16x1xf32> to vector<16x8xf32>
    %174 = arith.mulf %169, %173 : vector<16x8xf32>
    %cst_89 = arith.constant dense<0.000000e+00> : vector<16x8xf32>
    %175 = tpu.matmul %174, %163, %cst_89 {dimension_numbers = #tpu.dot_dimension_numbers<[1], [0], [0], [1], [0, 0, 1, 1], [], []>} : vector<16x8xf32>, vector<8x8xf32>, vector<16x8xf32> -> vector<16x8xf32>
    %176 = arith.index_cast %c3_i32 : i32 to index
    %c0_90 = arith.constant 0 : index
    %c0_91 = arith.constant 0 : index
    %177 = vector.load %arg10[%176, %c0_90, %c0_91] : memref<4x8x32xf32, #tpu.memory_space<vmem>>, vector<1x8x32xf32>
    %178 = vector.shape_cast %177 : vector<1x8x32xf32> to vector<8x32xf32>
    %cst_92 = arith.constant dense<0.000000e+00> : vector<16x32xf32>
    %179 = tpu.matmul %175, %178, %cst_92 {dimension_numbers = #tpu.dot_dimension_numbers<[1], [0], [0], [1], [0, 0, 1, 1], [], []>} : vector<16x8xf32>, vector<8x32xf32>, vector<16x32xf32> -> vector<16x32xf32>
    %180 = arith.addf %136, %179 : vector<16x32xf32>
    %c4_i32 = arith.constant 4 : i32
    %c0_93 = arith.constant 0 : index
    %c0_94 = arith.constant 0 : index
    %181 = vector.load %arg11[%c0_93, %c0_94] : memref<1x32xf32, #tpu.memory_space<vmem>>, vector<1x32xf32>
    %182 = vector.broadcast %181 : vector<1x32xf32> to vector<16x32xf32>
    %183 = arith.addf %180, %182 : vector<16x32xf32>
    %c0_95 = arith.constant 0 : index
    %c0_96 = arith.constant 0 : index
    %c0_97 = arith.constant 0 : index
    %184 = vector.load %arg12[%c0_95, %c0_96, %c0_97] : memref<1x16x32xf32, #tpu.memory_space<vmem>>, vector<1x16x32xf32>
    %185 = vector.shape_cast %184 : vector<1x16x32xf32> to vector<16x32xf32>
    %186 = vector.shape_cast %183 : vector<16x32xf32> to vector<1x16x32xf32>
    tpu.vector_store %arg12[%c0_95, %c0_96, %c0_97], %186 {strides = array<i32>} : memref<1x16x32xf32, #tpu.memory_space<vmem>>, vector<1x16x32xf32>,
    return
  }
  func.func @transform_0(%arg0: i32, %arg1: i32) -> (i32, i32, i32) {
    %c0_i32 = arith.constant 0 : i32
    %c0_i32_0 = arith.constant 0 : i32
    return %arg0, %arg1, %c0_i32 : i32, i32, i32
  }
  func.func @transform_1(%arg0: i32, %arg1: i32) -> (i32, i32, i32) {
    %c0_i32 = arith.constant 0 : i32
    %c0_i32_0 = arith.constant 0 : i32
    %c0_i32_1 = arith.constant 0 : i32
    return %arg0, %c0_i32, %c0_i32_0 : i32, i32, i32
  }
  func.func @transform_2(%arg0: i32, %arg1: i32) -> (i32, i32, i32) {
    %c0_i32 = arith.constant 0 : i32
    %c0_i32_0 = arith.constant 0 : i32
    %c0_i32_1 = arith.constant 0 : i32
    %c0_i32_2 = arith.constant 0 : i32
    return %c0_i32, %c0_i32_0, %c0_i32_1 : i32, i32, i32
  }
  func.func @transform_3(%arg0: i32, %arg1: i32) -> (i32, i32, i32) {
    %c0_i32 = arith.constant 0 : i32
    %c0_i32_0 = arith.constant 0 : i32
    %c0_i32_1 = arith.constant 0 : i32
    %c0_i32_2 = arith.constant 0 : i32
    return %c0_i32, %c0_i32_0, %c0_i32_1 : i32, i32, i32
  }
  func.func @transform_4(%arg0: i32, %arg1: i32) -> (i32, i32, i32) {
    %c0_i32 = arith.constant 0 : i32
    %c0_i32_0 = arith.constant 0 : i32
    %c0_i32_1 = arith.constant 0 : i32
    %c0_i32_2 = arith.constant 0 : i32
    return %c0_i32, %c0_i32_0, %c0_i32_1 : i32, i32, i32
  }
  func.func @transform_5(%arg0: i32, %arg1: i32) -> (i32, i32, i32) {
    %c0_i32 = arith.constant 0 : i32
    %c0_i32_0 = arith.constant 0 : i32
    %c0_i32_1 = arith.constant 0 : i32
    %c0_i32_2 = arith.constant 0 : i32
    return %c0_i32, %c0_i32_0, %c0_i32_1 : i32, i32, i32
  }
  func.func @transform_6(%arg0: i32, %arg1: i32) -> (i32, i32, i32) {
    %c0_i32 = arith.constant 0 : i32
    %c0_i32_0 = arith.constant 0 : i32
    %c0_i32_1 = arith.constant 0 : i32
    %c0_i32_2 = arith.constant 0 : i32
    return %c0_i32, %c0_i32_0, %c0_i32_1 : i32, i32, i32
  }
  func.func @transform_7(%arg0: i32, %arg1: i32) -> (i32, i32, i32) {
    %c0_i32 = arith.constant 0 : i32
    %c0_i32_0 = arith.constant 0 : i32
    %c0_i32_1 = arith.constant 0 : i32
    %c0_i32_2 = arith.constant 0 : i32
    return %c0_i32, %c0_i32_0, %c0_i32_1 : i32, i32, i32
  }
  func.func @transform_8(%arg0: i32, %arg1: i32) -> (i32, i32, i32) {
    %c0_i32 = arith.constant 0 : i32
    %c0_i32_0 = arith.constant 0 : i32
    %c0_i32_1 = arith.constant 0 : i32
    %c0_i32_2 = arith.constant 0 : i32
    return %c0_i32, %c0_i32_0, %c0_i32_1 : i32, i32, i32
  }
  func.func @transform_9(%arg0: i32, %arg1: i32) -> (i32, i32) {
    %c0_i32 = arith.constant 0 : i32
    %c0_i32_0 = arith.constant 0 : i32
    %c0_i32_1 = arith.constant 0 : i32
    return %c0_i32, %c0_i32_0 : i32, i32
  }
  func.func @transform_10(%arg0: i32, %arg1: i32) -> (i32, i32, i32) {
    %c0_i32 = arith.constant 0 : i32
    %c0_i32_0 = arith.constant 0 : i32
    return %arg0, %arg1, %c0_i32 : i32, i32, i32
  }
}

</mosaic_0001>

<llo_original>
// kernel: tpu_custom_call.1
$region0: #{tpu_custom_call.1}
  #allocation0 [shape = 'u32[]', space=smem, size = 0x4, offset = 0x4, fixed_abs, tag = 'smem constant byte address 0x4 - core index']
  #allocation1 [shape = 'u32[144,128]{1,0:T(1,128)}', space=vmem, size = 0x12000, scoped, tag = 'internal scratch']
  %s0 = inlined_call_operand.vmem [shape: f32[2,16,32], index: 0, kind: input, shape index: {}]
  %s1 = inlined_call_operand.vmem [shape: f32[2,8,24], index: 1, kind: input, shape index: {}]
  %s2 = inlined_call_operand.vmem [shape: f32[4,32,8], index: 2, kind: input, shape index: {}]
  %s3 = inlined_call_operand.vmem [shape: f32[4,1,8], index: 3, kind: input, shape index: {}]
  %s4 = inlined_call_operand.vmem [shape: f32[4,24,8], index: 4, kind: input, shape index: {}]
  %s5 = inlined_call_operand.vmem [shape: f32[4,1,8], index: 5, kind: input, shape index: {}]
  %s6 = inlined_call_operand.vmem [shape: f32[4,24,8], index: 6, kind: input, shape index: {}]
  %s7 = inlined_call_operand.vmem [shape: f32[4,1,8], index: 7, kind: input, shape index: {}]
  %s8 = inlined_call_operand.vmem [shape: f32[4,8,32], index: 8, kind: input, shape index: {}]
  %s9 = inlined_call_operand.vmem [shape: f32[1,32], index: 9, kind: input, shape index: {}]
  %s10 = inlined_call_operand.hbm [shape: f32[2,16,32], index: 10, kind: output, shape index: {}]
  %s11 = sld [smem:[#allocation0]]
  $region73: #{tpu_custom_call.1} parent=0
    _
  %s13 = ssub.s32 1, %s11
  %s14 = scalar_select 0, %s13, %s11
  $region1: #{tpu_custom_call.1} parent=0
    #allocation2 [shape = 'u8[16384]{0}', space=vmem, size = 0x4000, scoped, tag = 'output window, operand 0']
    #allocation3 [shape = 's32[2]{0}', space=sflag, size = 0x8, scoped, tag = 'scoped memory for tpu_custom_call.1']
    %15 = vsyncpa [#allocation3], 0
    %s16 = scalar_lea.sflag [#allocation3], 1
    %17 = vsyncpa %s16, 0
    loop: start=0, step=1, limit=4
    $region2: #{tpu_custom_call.1} parent=1 // loop_pre_header
      _
    $region3: #{tpu_custom_call.1} parent=1 // loop_header
      %s19 = sphi 0, %s23
      %p20 = scmp.ge.s32.totalorder %s19, 4
      %s26 = sphi 0, %s38
      %s27 = sphi 0, %s34
      %s28 = sphi 0, %s26
      %s29 = sphi 0, %s27
      %s30 = sphi 0, %s28
      %s31 = sphi 0, %s29
      %s43 = sphi 0, %s45
      %s46 = sphi 0, %s43
      %s47 = sphi 0, %s46
      %s63 = sphi 0, %s47
      %s69 = sphi 0, %s71
      %s72 = sphi 0, %s69
      %s73 = sphi 0, %s72
      %s89 = sphi 0, %s73
      %s93 = sphi 0, %s93
      %s95 = sphi 0, %s93
      %s96 = sphi 0, %s95
      %s110 = sphi 0, %s96
      %s114 = sphi 0, %s114
      %s116 = sphi 0, %s114
      %s117 = sphi 0, %s116
      %s131 = sphi 0, %s117
      %s135 = sphi 0, %s135
      %s137 = sphi 0, %s135
      %s138 = sphi 0, %s137
      %s152 = sphi 0, %s138
      %s156 = sphi 0, %s156
      %s158 = sphi 0, %s156
      %s159 = sphi 0, %s158
      %s173 = sphi 0, %s159
      %s177 = sphi 0, %s177
      %s179 = sphi 0, %s177
      %s180 = sphi 0, %s179
      %s194 = sphi 0, %s180
      %s198 = sphi 0, %s198
      %s200 = sphi 0, %s198
      %s201 = sphi 0, %s200
      %s215 = sphi 0, %s201
      %s219 = sphi 0, %s219
      %s221 = sphi 0, %s219
      %s222 = sphi 0, %s221
      %s236 = sphi 0, %s222
      %s240 = sphi 0, %s240
      %s242 = sphi 0, %s240
      %s243 = sphi 0, %s242
      %s257 = sphi 0, %s243
      %s265 = sphi 0, %s267
      %s268 = sphi 0, %s265
      %s269 = sphi 0, %s268
      %s285 = sphi 0, %s269
    $region4: #{tpu_custom_call.1} parent=1 // loop_header_branch
      %22 = sbr.rel (%p20) target = $region8
    $region5: #{tpu_custom_call.1} parent=1 // loop_body
      %s24 = ssub.s32 %s19, 1
      %s25 = ssub.s32 %s19, 2
      %s32 = sadd.s32 1, %s27
      %p33 = scmp.ge.s32.totalorder %s32, 1
      %s34 = scalar_select %p33, 0, %s32
      %s35 = sadd.s32 1, %s26
      %s36 = scalar_select %p33, %s35, %s26
      %p37 = scmp.ge.s32.totalorder %s36, 2
      %s38 = scalar_select %p37, 0, %s36
      %s39 = ssub.s32 %s26, %s38
      %s40 = ssub.s32 %s27, %s34
      %s41 = sor.u32 %s39, %s40
      %p42 = scmp.eq.s32.totalorder %s41, 0
      %s44 = sadd.s32 %s43, 1
      %s45 = scalar_select %p42, %s43, %s44
      %p48 = pneg %p42
      %p49 = scmp.eq.s32.totalorder %s19, 1
      %p50 = por %p48, %p49
      %p51 = scmp.ne.s32.totalorder %s43, %s46
      %p52 = scmp.eq.s32.totalorder %s19, 0
      %p53 = por %p51, %p52
      %p54 = scmp.ne.s32.totalorder %s43, %s46
      %p55 = scmp.eq.s32.totalorder %s24, 1
      %p56 = por %p54, %p55
      %p57 = scmp.ne.s32.totalorder %s46, %s47
      %p58 = scmp.eq.s32.totalorder %s24, 0
      %p59 = por %p57, %p58
      %p60 = scmp.ne.s32.totalorder %s46, %s47
      %p61 = scmp.eq.s32.totalorder %s25, 1
      %p62 = por %p60, %p61
      %p64 = scmp.ne.s32.totalorder %s47, %s63
      %p65 = scmp.eq.s32.totalorder %s25, 0
      %p66 = por %p64, %p65
      %s67 = ssub.s32 %s26, %s38
      %p68 = scmp.eq.s32.totalorder %s67, 0
      %s70 = sadd.s32 %s69, 1
      %s71 = scalar_select %p68, %s69, %s70
      %p74 = pneg %p68
      %p75 = scmp.eq.s32.totalorder %s19, 1
      %p76 = por %p74, %p75
      %p77 = scmp.ne.s32.totalorder %s69, %s72
      %p78 = scmp.eq.s32.totalorder %s19, 0
      %p79 = por %p77, %p78
      %p80 = scmp.ne.s32.totalorder %s69, %s72
      %p81 = scmp.eq.s32.totalorder %s24, 1
      %p82 = por %p80, %p81
      %p83 = scmp.ne.s32.totalorder %s72, %s73
      %p84 = scmp.eq.s32.totalorder %s24, 0
      %p85 = por %p83, %p84
      %p86 = scmp.ne.s32.totalorder %s72, %s73
      %p87 = scmp.eq.s32.totalorder %s25, 1
      %p88 = por %p86, %p87
      %p90 = scmp.ne.s32.totalorder %s73, %s89
      %p91 = scmp.eq.s32.totalorder %s25, 0
      %p92 = por %p90, %p91
      %s94 = sadd.s32 %s93, 1
      %p97 = scmp.eq.s32.totalorder %s19, 1
      %p98 = scmp.ne.s32.totalorder %s93, %s95
      %p99 = scmp.eq.s32.totalorder %s19, 0
      %p100 = por %p98, %p99
      %p101 = scmp.ne.s32.totalorder %s93, %s95
      %p102 = scmp.eq.s32.totalorder %s24, 1
      %p103 = por %p101, %p102
      %p104 = scmp.ne.s32.totalorder %s95, %s96
      %p105 = scmp.eq.s32.totalorder %s24, 0
      %p106 = por %p104, %p105
      %p107 = scmp.ne.s32.totalorder %s95, %s96
      %p108 = scmp.eq.s32.totalorder %s25, 1
      %p109 = por %p107, %p108
      %p111 = scmp.ne.s32.totalorder %s96, %s110
      %p112 = scmp.eq.s32.totalorder %s25, 0
      %p113 = por %p111, %p112
      %s115 = sadd.s32 %s114, 1
      %p118 = scmp.eq.s32.totalorder %s19, 1
      %p119 = scmp.ne.s32.totalorder %s114, %s116
      %p120 = scmp.eq.s32.totalorder %s19, 0
      %p121 = por %p119, %p120
      %p122 = scmp.ne.s32.totalorder %s114, %s116
      %p123 = scmp.eq.s32.totalorder %s24, 1
      %p124 = por %p122, %p123
      %p125 = scmp.ne.s32.totalorder %s116, %s117
      %p126 = scmp.eq.s32.totalorder %s24, 0
      %p127 = por %p125, %p126
      %p128 = scmp.ne.s32.totalorder %s116, %s117
      %p129 = scmp.eq.s32.totalorder %s25, 1
      %p130 = por %p128, %p129
      %p132 = scmp.ne.s32.totalorder %s117, %s131
      %p133 = scmp.eq.s32.totalorder %s25, 0
      %p134 = por %p132, %p133
      %s136 = sadd.s32 %s135, 1
      %p139 = scmp.eq.s32.totalorder %s19, 1
      %p140 = scmp.ne.s32.totalorder %s135, %s137
      %p141 = scmp.eq.s32.totalorder %s19, 0
      %p142 = por %p140, %p141
      %p143 = scmp.ne.s32.totalorder %s135, %s137
      %p144 = scmp.eq.s32.totalorder %s24, 1
      %p145 = por %p143, %p144
      %p146 = scmp.ne.s32.totalorder %s137, %s138
      %p147 = scmp.eq.s32.totalorder %s24, 0
      %p148 = por %p146, %p147
      %p149 = scmp.ne.s32.totalorder %s137, %s138
      %p150 = scmp.eq.s32.totalorder %s25, 1
      %p151 = por %p149, %p150
      %p153 = scmp.ne.s32.totalorder %s138, %s152
      %p154 = scmp.eq.s32.totalorder %s25, 0
      %p155 = por %p153, %p154
      %s157 = sadd.s32 %s156, 1
      %p160 = scmp.eq.s32.totalorder %s19, 1
      %p161 = scmp.ne.s32.totalorder %s156, %s158
      %p162 = scmp.eq.s32.totalorder %s19, 0
      %p163 = por %p161, %p162
      %p164 = scmp.ne.s32.totalorder %s156, %s158
      %p165 = scmp.eq.s32.totalorder %s24, 1
      %p166 = por %p164, %p165
      %p167 = scmp.ne.s32.totalorder %s158, %s159
      %p168 = scmp.eq.s32.totalorder %s24, 0
      %p169 = por %p167, %p168
      %p170 = scmp.ne.s32.totalorder %s158, %s159
      %p171 = scmp.eq.s32.totalorder %s25, 1
      %p172 = por %p170, %p171
      %p174 = scmp.ne.s32.totalorder %s159, %s173
      %p175 = scmp.eq.s32.totalorder %s25, 0
      %p176 = por %p174, %p175
      %s178 = sadd.s32 %s177, 1
      %p181 = scmp.eq.s32.totalorder %s19, 1
      %p182 = scmp.ne.s32.totalorder %s177, %s179
      %p183 = scmp.eq.s32.totalorder %s19, 0
      %p184 = por %p182, %p183
      %p185 = scmp.ne.s32.totalorder %s177, %s179
      %p186 = scmp.eq.s32.totalorder %s24, 1
      %p187 = por %p185, %p186
      %p188 = scmp.ne.s32.totalorder %s179, %s180
      %p189 = scmp.eq.s32.totalorder %s24, 0
      %p190 = por %p188, %p189
      %p191 = scmp.ne.s32.totalorder %s179, %s180
      %p192 = scmp.eq.s32.totalorder %s25, 1
      %p193 = por %p191, %p192
      %p195 = scmp.ne.s32.totalorder %s180, %s194
      %p196 = scmp.eq.s32.totalorder %s25, 0
      %p197 = por %p195, %p196
      %s199 = sadd.s32 %s198, 1
      %p202 = scmp.eq.s32.totalorder %s19, 1
      %p203 = scmp.ne.s32.totalorder %s198, %s200
      %p204 = scmp.eq.s32.totalorder %s19, 0
      %p205 = por %p203, %p204
      %p206 = scmp.ne.s32.totalorder %s198, %s200
      %p207 = scmp.eq.s32.totalorder %s24, 1
      %p208 = por %p206, %p207
      %p209 = scmp.ne.s32.totalorder %s200, %s201
      %p210 = scmp.eq.s32.totalorder %s24, 0
      %p211 = por %p209, %p210
      %p212 = scmp.ne.s32.totalorder %s200, %s201
      %p213 = scmp.eq.s32.totalorder %s25, 1
      %p214 = por %p212, %p213
      %p216 = scmp.ne.s32.totalorder %s201, %s215
      %p217 = scmp.eq.s32.totalorder %s25, 0
      %p218 = por %p216, %p217
      %s220 = sadd.s32 %s219, 1
      %p223 = scmp.eq.s32.totalorder %s19, 1
      %p224 = scmp.ne.s32.totalorder %s219, %s221
      %p225 = scmp.eq.s32.totalorder %s19, 0
      %p226 = por %p224, %p225
      %p227 = scmp.ne.s32.totalorder %s219, %s221
      %p228 = scmp.eq.s32.totalorder %s24, 1
      %p229 = por %p227, %p228
      %p230 = scmp.ne.s32.totalorder %s221, %s222
      %p231 = scmp.eq.s32.totalorder %s24, 0
      %p232 = por %p230, %p231
      %p233 = scmp.ne.s32.totalorder %s221, %s222
      %p234 = scmp.eq.s32.totalorder %s25, 1
      %p235 = por %p233, %p234
      %p237 = scmp.ne.s32.totalorder %s222, %s236
      %p238 = scmp.eq.s32.totalorder %s25, 0
      %p239 = por %p237, %p238
      %s241 = sadd.s32 %s240, 1
      %p244 = scmp.eq.s32.totalorder %s19, 1
      %p245 = scmp.ne.s32.totalorder %s240, %s242
      %p246 = scmp.eq.s32.totalorder %s19, 0
      %p247 = por %p245, %p246
      %p248 = scmp.ne.s32.totalorder %s240, %s242
      %p249 = scmp.eq.s32.totalorder %s24, 1
      %p250 = por %p248, %p249
      %p251 = scmp.ne.s32.totalorder %s242, %s243
      %p252 = scmp.eq.s32.totalorder %s24, 0
      %p253 = por %p251, %p252
      %p254 = scmp.ne.s32.totalorder %s242, %s243
      %p255 = scmp.eq.s32.totalorder %s25, 1
      %p256 = por %p254, %p255
      %p258 = scmp.ne.s32.totalorder %s243, %s257
      %p259 = scmp.eq.s32.totalorder %s25, 0
      %p260 = por %p258, %p259
      %s261 = ssub.s32 %s26, %s38
      %s262 = ssub.s32 %s27, %s34
      %s263 = sor.u32 %s261, %s262
      %p264 = scmp.eq.s32.totalorder %s263, 0
      %s266 = sadd.s32 %s265, 1
      %s267 = scalar_select %p264, %s265, %s266
      %p270 = pneg %p264
      %p271 = scmp.eq.s32.totalorder %s19, 1
      %p272 = por %p270, %p271
      %p273 = scmp.ne.s32.totalorder %s265, %s268
      %p274 = scmp.eq.s32.totalorder %s19, 0
      %p275 = por %p273, %p274
      %p276 = scmp.ne.s32.totalorder %s265, %s268
      %p277 = scmp.eq.s32.totalorder %s24, 1
      %p278 = por %p276, %p277
      %p279 = scmp.ne.s32.totalorder %s268, %s269
      %p280 = scmp.eq.s32.totalorder %s24, 0
      %p281 = por %p279, %p280
      %p282 = scmp.ne.s32.totalorder %s268, %s269
      %p283 = scmp.eq.s32.totalorder %s25, 1
      %p284 = por %p282, %p283
      %p286 = scmp.ne.s32.totalorder %s269, %s285
      %p287 = scmp.eq.s32.totalorder %s25, 0
      %p288 = por %p286, %p287
      %p289 = scmp.le.s32.totalorder 1, %s19
      %p290 = scmp.lt.s32.totalorder %s19, 3
      %p291 = pnand %p289, %p290
      %p292 = pneg %p291
      // Predicated region
      $region9: #{tpu_custom_call.1} parent=5 // pred_check
        _
      $region10: #{tpu_custom_call.1} parent=5 // pred_check_branch
        %294 = sbr.rel (%p291) target = $region12
      $region11: #{tpu_custom_call.1} parent=5 // pred_region
        %s295 = ssub.s32 %s19, 1
        // Predicated region
        $region13: #{tpu_custom_call.1} parent=11 // pred_check
          %p296 = pneg %p106
        $region14: #{tpu_custom_call.1} parent=11 // pred_check_branch
          %298 = sbr.rel (%p296) target = $region16
        $region15: #{tpu_custom_call.1} parent=11 // pred_region
          _
        $region16: #{tpu_custom_call.1} parent=11 // pred_fallthru
          _
        // Predicated region
        $region17: #{tpu_custom_call.1} parent=11 // pred_check
          %p299 = pneg %p127
        $region18: #{tpu_custom_call.1} parent=11 // pred_check_branch
          %301 = sbr.rel (%p299) target = $region20
        $region19: #{tpu_custom_call.1} parent=11 // pred_region
          _
        $region20: #{tpu_custom_call.1} parent=11 // pred_fallthru
          _
        // Predicated region
        $region21: #{tpu_custom_call.1} parent=11 // pred_check
          %p302 = pneg %p148
        $region22: #{tpu_custom_call.1} parent=11 // pred_check_branch
          %304 = sbr.rel (%p302) target = $region24
        $region23: #{tpu_custom_call.1} parent=11 // pred_region
          _
        $region24: #{tpu_custom_call.1} parent=11 // pred_fallthru
          _
        // Predicated region
        $region25: #{tpu_custom_call.1} parent=11 // pred_check
          %p305 = pneg %p169
        $region26: #{tpu_custom_call.1} parent=11 // pred_check_branch
          %307 = sbr.rel (%p305) target = $region28
        $region27: #{tpu_custom_call.1} parent=11 // pred_region
          _
        $region28: #{tpu_custom_call.1} parent=11 // pred_fallthru
          _
        // Predicated region
        $region29: #{tpu_custom_call.1} parent=11 // pred_check
          %p308 = pneg %p190
        $region30: #{tpu_custom_call.1} parent=11 // pred_check_branch
          %310 = sbr.rel (%p308) target = $region32
        $region31: #{tpu_custom_call.1} parent=11 // pred_region
          _
        $region32: #{tpu_custom_call.1} parent=11 // pred_fallthru
          _
        // Predicated region
        $region33: #{tpu_custom_call.1} parent=11 // pred_check
          %p311 = pneg %p211
        $region34: #{tpu_custom_call.1} parent=11 // pred_check_branch
          %313 = sbr.rel (%p311) target = $region36
        $region35: #{tpu_custom_call.1} parent=11 // pred_region
          _
        $region36: #{tpu_custom_call.1} parent=11 // pred_fallthru
          _
        // Predicated region
        $region37: #{tpu_custom_call.1} parent=11 // pred_check
          %p314 = pneg %p232
        $region38: #{tpu_custom_call.1} parent=11 // pred_check_branch
          %316 = sbr.rel (%p314) target = $region40
        $region39: #{tpu_custom_call.1} parent=11 // pred_region
          _
        $region40: #{tpu_custom_call.1} parent=11 // pred_fallthru
          _
        // Predicated region
        $region41: #{tpu_custom_call.1} parent=11 // pred_check
          %p317 = pneg %p253
        $region42: #{tpu_custom_call.1} parent=11 // pred_check_branch
          %319 = sbr.rel (%p317) target = $region44
        $region43: #{tpu_custom_call.1} parent=11 // pred_region
          _
        $region44: #{tpu_custom_call.1} parent=11 // pred_fallthru
          _
      $region12: #{tpu_custom_call.1} parent=5 // pred_fallthru
        _
      %p320 = scmp.lt.s32.totalorder %s19, 2
      // Predicated region
      $region45: #{tpu_custom_call.1} parent=5 // pred_check
        %p321 = pneg %p320
      $region46: #{tpu_custom_call.1} parent=5 // pred_check_branch
        %323 = sbr.rel (%p321) target = $region48
      $region47: #{tpu_custom_call.1} parent=5 // pred_region
        // Predicated region
        $region49: #{tpu_custom_call.1} parent=47 // pred_check
          %p324 = pneg %p53
        $region50: #{tpu_custom_call.1} parent=47 // pred_check_branch
          %326 = sbr.rel (%p324) target = $region52
        $region51: #{tpu_custom_call.1} parent=47 // pred_region
          %s327 = smul.u32 2, %s27
          %p328 = scmp.lt.s32.totalorder %s26, 1
          %s329 = scalar_select %p328, %s26, 1
          %p330 = scmp.lt.s32.totalorder %s327, 1
          %s331 = scalar_select %p330, %s327, 1
          %s332 = smul.addr %s329, 2
          %s333 = sadd.s32 %s331, %s332
          %s334 = smul.addr %s333, 8
          %s335 = scalar_lea.vmem %s0, %s334
          %s336 = smul.u32 2, %s27
        $region52: #{tpu_custom_call.1} parent=47 // pred_fallthru
          _
        // Predicated region
        $region53: #{tpu_custom_call.1} parent=47 // pred_check
          %p337 = pneg %p79
        $region54: #{tpu_custom_call.1} parent=47 // pred_check_branch
          %339 = sbr.rel (%p337) target = $region56
        $region55: #{tpu_custom_call.1} parent=47 // pred_region
          %p340 = scmp.lt.s32.totalorder %s26, 1
          %s341 = scalar_select %p340, %s26, 1
          %s342 = smul.addr %s341, 8
          %s343 = scalar_lea.vmem %s1, %s342
        $region56: #{tpu_custom_call.1} parent=47 // pred_fallthru
          _
      $region48: #{tpu_custom_call.1} parent=5 // pred_fallthru
        _
      %p344 = scmp.le.s32.totalorder 1, %s19
      %p345 = scmp.lt.s32.totalorder %s19, 3
      %p346 = pnand %p344, %p345
      %p347 = pneg %p346
      // Predicated region
      $region57: #{tpu_custom_call.1} parent=5 // pred_check
        _
      $region58: #{tpu_custom_call.1} parent=5 // pred_check_branch
        %349 = sbr.rel (%p346) target = $region60
      $region59: #{tpu_custom_call.1} parent=5 // pred_region
        %s350 = ssub.s32 %s19, 1
        %s351 = smul.u32 2, %s29
        %p352 = scmp.lt.s32.totalorder %s28, 1
        %s353 = scalar_select %p352, %s28, 1
        %p354 = scmp.lt.s32.totalorder %s351, 1
        %s355 = scalar_select %p354, %s351, 1
        %s356 = smul.addr %s353, 2
        %s357 = sadd.s32 %s355, %s356
        %s358 = smul.addr %s357, 8
        %s359 = scalar_lea.vmem %s0, %s358
        %p360 = pneg %p59
        %p361 = pneg %p56
        %p362 = scmp.lt.s32.totalorder %s28, 1
        %s363 = scalar_select %p362, %s28, 1
        %s364 = smul.addr %s363, 8
        %s365 = scalar_lea.vmem %s1, %s364
        %p366 = pneg %p85
        %p367 = pneg %p82
        %p368 = pneg %p106
        %p369 = pneg %p103
        %p370 = pneg %p127
        %p371 = pneg %p124
        %p372 = pneg %p148
        %p373 = pneg %p145
        %p374 = pneg %p169
        %p375 = pneg %p166
        %p376 = pneg %p190
        %p377 = pneg %p187
        %p378 = pneg %p211
        %p379 = pneg %p208
        %p380 = pneg %p232
        %p381 = pneg %p229
        %p382 = pneg %p253
        %p383 = pneg %p250
        %p384 = pneg %p281
        %p385 = pneg %p278
        %s386 = sand.u32 %s268, 1
        %s387 = scalar_lea.sflag [#allocation3], %s386
        %s388 = sand.u32 %s268, 1
        %s389 = smul.addr %s388, 16
        %s390 = scalar_lea.vmem [#allocation2], %s389
        %s391 = smul.u32 2, %s29
        %p392 = scmp.lt.s32.totalorder %s28, 1
        %s393 = scalar_select %p392, %s28, 1
        %p394 = scmp.lt.s32.totalorder %s391, 1
        %s395 = scalar_select %p394, %s391, 1
        %s396 = smul.addr %s393, 2
        %s397 = sadd.s32 %s395, %s396
        %s398 = smul.addr %s397, 8
        %s399 = scalar_lea.vmem %s0, %s398
        %s400 = smul.u32 2, %s29
        %p401 = scmp.lt.s32.totalorder %s28, 1
        %s402 = scalar_select %p401, %s28, 1
        %s403 = smul.addr %s402, 8
        %s404 = scalar_lea.vmem %s1, %s403
        %s405 = smul.u32 2, %s29
        %v406 = vld [vmem:[%s399] sm:$0xff]
        %v407 = vld [vmem:[%s399 + $0x8] sm:$0xff]
        %v408 = vld [vmem:[%s404] sm:$0xff]
        %v409 = vld [vmem:[%s2] sm:$0xff]
        %v410 = vld [vmem:[%s2 + $0x8] sm:$0xff]
        %v411 = vld [vmem:[%s2 + $0x10] sm:$0xff]
        %v412 = vld [vmem:[%s2 + $0x18] sm:$0xff]
        %v413 = vld [vmem:[%s3] sm:$0x1]
        %v415 = vlaneseq
        %v416 = vshrl.u32 %v415, 7
        %v417 = vsub.s32 0, %v416
        %v418 = vrot.slane %v413, %v417
        %vm420 = vcmask 261120
        %v422 = vsel %vm420, %v406, 0
        %v425 = vsel %vm420, %v407, 0
        %427 = vmatprep.subr.mxu0 0.0
        %428 = vmatpush1.msra.mxu0 %v409
        %429 = vmatprep.subr.mxu0 0.0
        %430 = vmatpush1.msra.mxu0 %v410
        %431 = vmatprep.subr.mxu0 0.0
        %432 = vmatpush1.msra.mxu0 %v411
        %433 = vmatprep.subr.mxu0 0.0
        %434 = vmatpush1.msra.mxu0 %v412
        %435 = vmatprep.subr.mxu0 0.0
        %436 = vmatpush1.msra.mxu0 0.0
        %437 = vmatprep.subr.mxu0 0.0
        %438 = vmatpush1.msra.mxu0 0.0
        %439 = vmatprep.subr.mxu0 0.0
        %440 = vmatpush1.msra.mxu0 0.0
        %441 = vmatprep.subr.mxu0 0.0
        %442 = vmatpush1.msra.mxu0 0.0
        %443 = vmatprep.subr.mxu0 0.0
        %444 = vmatpush1.msra.mxu0 0.0
        %445 = vmatprep.subr.mxu0 0.0
        %446 = vmatpush1.msra.mxu0 0.0
        %447 = vmatprep.subr.mxu0 0.0
        %448 = vmatpush1.msra.mxu0 0.0
        %449 = vmatprep.subr.mxu0 0.0
        %450 = vmatpush1.msra.mxu0 0.0
        %451 = vmatprep.subr.mxu0 0.0
        %452 = vmatpush1.msra.mxu0 0.0
        %453 = vmatprep.subr.mxu0 0.0
        %454 = vmatpush1.msra.mxu0 0.0
        %455 = vmatprep.subr.mxu0 0.0
        %456 = vmatpush1.msra.mxu0 0.0
        %457 = vmatprep.subr.mxu0 0.0
        %458 = vmatpush1.msra.mxu0 0.0
        %459 = vmatprep.subr.mxu0 0.0
        %460 = vmatpush1.msra.mxu0 0.0
        %461 = vmatprep.subr.mxu0 0.0
        %462 = vmatpush1.msra.mxu0 0.0
        %463 = vmatprep.subr.mxu0 0.0
        %464 = vmatpush1.msra.mxu0 0.0
        %465 = vmatprep.subr.mxu0 0.0
        %466 = vmatpush1.msra.mxu0 0.0
        %467 = vmatprep.subr.mxu0 0.0
        %468 = vmatpush1.msra.mxu0 0.0
        %469 = vmatprep.subr.mxu0 0.0
        %470 = vmatpush1.msra.mxu0 0.0
        %471 = vmatprep.subr.mxu0 0.0
        %472 = vmatpush1.msra.mxu0 0.0
        %473 = vmatprep.subr.mxu0 0.0
        %474 = vmatpush1.msra.mxu0 0.0
        %475 = vmatprep.subr.mxu0 0.0
        %476 = vmatpush1.msra.mxu0 0.0
        %477 = vmatprep.subr.mxu0 0.0
        %478 = vmatpush1.msra.mxu0 0.0
        %479 = vmatprep.subr.mxu0 0.0
        %480 = vmatpush1.msra.mxu0 0.0
        %481 = vmatprep.subr.mxu0 0.0
        %482 = vmatpush1.msra.mxu0 0.0
        %483 = vmatprep.subr.mxu0 0.0
        %484 = vmatpush1.msra.mxu0 0.0
        %485 = vmatprep.subr.mxu0 0.0
        %486 = vmatpush1.msra.mxu0 0.0
        %487 = vmatprep.subr.mxu0 0.0
        %488 = vmatpush1.msra.mxu0 0.0
        %489 = vmatprep.subr.mxu0 0.0
        %490 = vmatpush1.msra.mxu0 0.0
        %491 = vmatprep.mubr.f32.mxu0 0.0
        %492 = vmatmul.mubr.f32.gmra.mrb[0].mxu0 %v422
        %v493 = vpop.f32.mrb[0].mxu0
        %v494 = vadd.f32 %v418, %v493
        %v495 = vpop.f32.mrb[0].mxu0
        %496 = vmatprep.mubr.f32.mxu0 0.0
        %497 = vmatmul.mubr.f32.gmra.mrb[0].mxu0 %v425
        %v498 = vpop.f32.mrb[0].mxu0
        %v499 = vadd.f32 %v418, %v498
        %v500 = vpop.f32.mrb[0].mxu0
        %501 = vdwg.mxu0
        %v502 = vld [vmem:[%s4] sm:$0xff]
        %v503 = vld [vmem:[%s4 + $0x8] sm:$0xff]
        %v504 = vld [vmem:[%s4 + $0x10] sm:$0xff]
        %v505 = vld [vmem:[%s5] sm:$0x1]
        %v507 = vlaneseq
        %v508 = vshrl.u32 %v507, 7
        %v509 = vsub.s32 0, %v508
        %v510 = vrot.slane %v505, %v509
        %vm512 = vcmask 195584
        %v514 = vsel %vm512, %v408, 0
        %516 = vmatprep.subr.mxu0 0.0
        %517 = vmatpush1.msra.mxu0 %v502
        %518 = vmatprep.subr.mxu0 0.0
        %519 = vmatpush1.msra.mxu0 %v503
        %520 = vmatprep.subr.mxu0 0.0
        %521 = vmatpush1.msra.mxu0 %v504
        %522 = vmatprep.subr.mxu0 0.0
        %523 = vmatpush1.msra.mxu0 0.0
        %524 = vmatprep.subr.mxu0 0.0
        %525 = vmatpush1.msra.mxu0 0.0
        %526 = vmatprep.subr.mxu0 0.0
        %527 = vmatpush1.msra.mxu0 0.0
        %528 = vmatprep.subr.mxu0 0.0
        %529 = vmatpush1.msra.mxu0 0.0
        %530 = vmatprep.subr.mxu0 0.0
        %531 = vmatpush1.msra.mxu0 0.0
        %532 = vmatprep.subr.mxu0 0.0
        %533 = vmatpush1.msra.mxu0 0.0
        %534 = vmatprep.subr.mxu0 0.0
        %535 = vmatpush1.msra.mxu0 0.0
        %536 = vmatprep.subr.mxu0 0.0
        %537 = vmatpush1.msra.mxu0 0.0
        %538 = vmatprep.subr.mxu0 0.0
        %539 = vmatpush1.msra.mxu0 0.0
        %540 = vmatprep.subr.mxu0 0.0
        %541 = vmatpush1.msra.mxu0 0.0
        %542 = vmatprep.subr.mxu0 0.0
        %543 = vmatpush1.msra.mxu0 0.0
        %544 = vmatprep.subr.mxu0 0.0
        %545 = vmatpush1.msra.mxu0 0.0
        %546 = vmatprep.subr.mxu0 0.0
        %547 = vmatpush1.msra.mxu0 0.0
        %548 = vmatprep.subr.mxu0 0.0
        %549 = vmatpush1.msra.mxu0 0.0
        %550 = vmatprep.subr.mxu0 0.0
        %551 = vmatpush1.msra.mxu0 0.0
        %552 = vmatprep.subr.mxu0 0.0
        %553 = vmatpush1.msra.mxu0 0.0
        %554 = vmatprep.subr.mxu0 0.0
        %555 = vmatpush1.msra.mxu0 0.0
        %556 = vmatprep.subr.mxu0 0.0
        %557 = vmatpush1.msra.mxu0 0.0
        %558 = vmatprep.subr.mxu0 0.0
        %559 = vmatpush1.msra.mxu0 0.0
        %560 = vmatprep.subr.mxu0 0.0
        %561 = vmatpush1.msra.mxu0 0.0
        %562 = vmatprep.subr.mxu0 0.0
        %563 = vmatpush1.msra.mxu0 0.0
        %564 = vmatprep.subr.mxu0 0.0
        %565 = vmatpush1.msra.mxu0 0.0
        %566 = vmatprep.subr.mxu0 0.0
        %567 = vmatpush1.msra.mxu0 0.0
        %568 = vmatprep.subr.mxu0 0.0
        %569 = vmatpush1.msra.mxu0 0.0
        %570 = vmatprep.subr.mxu0 0.0
        %571 = vmatpush1.msra.mxu0 0.0
        %572 = vmatprep.subr.mxu0 0.0
        %573 = vmatpush1.msra.mxu0 0.0
        %574 = vmatprep.subr.mxu0 0.0
        %575 = vmatpush1.msra.mxu0 0.0
        %576 = vmatprep.subr.mxu0 0.0
        %577 = vmatpush1.msra.mxu0 0.0
        %578 = vmatprep.subr.mxu0 0.0
        %579 = vmatpush1.msra.mxu0 0.0
        %580 = vmatprep.mubr.f32.mxu0 0.0
        %581 = vmatmul.mubr.f32.gmra.mrb[0].mxu0 %v514
        %v582 = vpop.f32.mrb[0].mxu0
        %v583 = vadd.f32 %v510, %v582
        %v584 = vpop.f32.mrb[0].mxu0
        %585 = vdwg.mxu0
        %v586 = vld [vmem:[%s6] sm:$0xff]
        %v587 = vld [vmem:[%s6 + $0x8] sm:$0xff]
        %v588 = vld [vmem:[%s6 + $0x10] sm:$0xff]
        %v589 = vld [vmem:[%s7] sm:$0x1]
        %v591 = vlaneseq
        %v592 = vshrl.u32 %v591, 7
        %v593 = vsub.s32 0, %v592
        %v594 = vrot.slane %v589, %v593
        %596 = vmatprep.subr.mxu0 0.0
        %597 = vmatpush1.msra.mxu0 %v586
        %598 = vmatprep.subr.mxu0 0.0
        %599 = vmatpush1.msra.mxu0 %v587
        %600 = vmatprep.subr.mxu0 0.0
        %601 = vmatpush1.msra.mxu0 %v588
        %602 = vmatprep.subr.mxu0 0.0
        %603 = vmatpush1.msra.mxu0 0.0
        %604 = vmatprep.subr.mxu0 0.0
        %605 = vmatpush1.msra.mxu0 0.0
        %606 = vmatprep.subr.mxu0 0.0
        %607 = vmatpush1.msra.mxu0 0.0
        %608 = vmatprep.subr.mxu0 0.0
        %609 = vmatpush1.msra.mxu0 0.0
        %610 = vmatprep.subr.mxu0 0.0
        %611 = vmatpush1.msra.mxu0 0.0
        %612 = vmatprep.subr.mxu0 0.0
        %613 = vmatpush1.msra.mxu0 0.0
        %614 = vmatprep.subr.mxu0 0.0
        %615 = vmatpush1.msra.mxu0 0.0
        %616 = vmatprep.subr.mxu0 0.0
        %617 = vmatpush1.msra.mxu0 0.0
        %618 = vmatprep.subr.mxu0 0.0
        %619 = vmatpush1.msra.mxu0 0.0
        %620 = vmatprep.subr.mxu0 0.0
        %621 = vmatpush1.msra.mxu0 0.0
        %622 = vmatprep.subr.mxu0 0.0
        %623 = vmatpush1.msra.mxu0 0.0
        %624 = vmatprep.subr.mxu0 0.0
        %625 = vmatpush1.msra.mxu0 0.0
        %626 = vmatprep.subr.mxu0 0.0
        %627 = vmatpush1.msra.mxu0 0.0
        %628 = vmatprep.subr.mxu0 0.0
        %629 = vmatpush1.msra.mxu0 0.0
        %630 = vmatprep.subr.mxu0 0.0
        %631 = vmatpush1.msra.mxu0 0.0
        %632 = vmatprep.subr.mxu0 0.0
        %633 = vmatpush1.msra.mxu0 0.0
        %634 = vmatprep.subr.mxu0 0.0
        %635 = vmatpush1.msra.mxu0 0.0
        %636 = vmatprep.subr.mxu0 0.0
        %637 = vmatpush1.msra.mxu0 0.0
        %638 = vmatprep.subr.mxu0 0.0
        %639 = vmatpush1.msra.mxu0 0.0
        %640 = vmatprep.subr.mxu0 0.0
        %641 = vmatpush1.msra.mxu0 0.0
        %642 = vmatprep.subr.mxu0 0.0
        %643 = vmatpush1.msra.mxu0 0.0
        %644 = vmatprep.subr.mxu0 0.0
        %645 = vmatpush1.msra.mxu0 0.0
        %646 = vmatprep.subr.mxu0 0.0
        %647 = vmatpush1.msra.mxu0 0.0
        %648 = vmatprep.subr.mxu0 0.0
        %649 = vmatpush1.msra.mxu0 0.0
        %650 = vmatprep.subr.mxu0 0.0
        %651 = vmatpush1.msra.mxu0 0.0
        %652 = vmatprep.subr.mxu0 0.0
        %653 = vmatpush1.msra.mxu0 0.0
        %654 = vmatprep.subr.mxu0 0.0
        %655 = vmatpush1.msra.mxu0 0.0
        %656 = vmatprep.subr.mxu0 0.0
        %657 = vmatpush1.msra.mxu0 0.0
        %658 = vmatprep.subr.mxu0 0.0
        %659 = vmatpush1.msra.mxu0 0.0
        %660 = vmatprep.mubr.f32.mxu0 0.0
        %661 = vmatmul.mubr.f32.gmra.mrb[0].mxu0 %v514
        %v662 = vpop.f32.mrb[0].mxu0
        %v663 = vadd.f32 %v594, %v662
        %v664 = vpop.f32.mrb[0].mxu0
        %665 = vdwg.mxu0
        %vm666 = vcmask 64512
        %v668 = vsel %vm666, %v494, 0
        %v671 = vsel %vm666, %v499, 0
        %v674 = vsel %vm666, %v583, 0
        %676 = vmatprep.subr.mxu0 0.0
        %677 = vmatpush1.xpose.msra.mxu0 %v674
        %678 = vmatprep.subr.mxu0 0.0
        %679 = vmatpush1.xpose.msra.mxu0 0.0
        %680 = vmatprep.subr.mxu0 0.0
        %681 = vmatpush1.xpose.msra.mxu0 0.0
        %682 = vmatprep.subr.mxu0 0.0
        %683 = vmatpush1.xpose.msra.mxu0 0.0
        %684 = vmatprep.subr.mxu0 0.0
        %685 = vmatpush1.xpose.msra.mxu0 0.0
        %686 = vmatprep.subr.mxu0 0.0
        %687 = vmatpush1.xpose.msra.mxu0 0.0
        %688 = vmatprep.subr.mxu0 0.0
        %689 = vmatpush1.xpose.msra.mxu0 0.0
        %690 = vmatprep.subr.mxu0 0.0
        %691 = vmatpush1.xpose.msra.mxu0 0.0
        %692 = vmatprep.subr.mxu0 0.0
        %693 = vmatpush1.xpose.msra.mxu0 0.0
        %694 = vmatprep.subr.mxu0 0.0
        %695 = vmatpush1.xpose.msra.mxu0 0.0
        %696 = vmatprep.subr.mxu0 0.0
        %697 = vmatpush1.xpose.msra.mxu0 0.0
        %698 = vmatprep.subr.mxu0 0.0
        %699 = vmatpush1.xpose.msra.mxu0 0.0
        %700 = vmatprep.subr.mxu0 0.0
        %701 = vmatpush1.xpose.msra.mxu0 0.0
        %702 = vmatprep.subr.mxu0 0.0
        %703 = vmatpush1.xpose.msra.mxu0 0.0
        %704 = vmatprep.subr.mxu0 0.0
        %705 = vmatpush1.xpose.msra.mxu0 0.0
        %706 = vmatprep.subr.mxu0 0.0
        %707 = vmatpush1.xpose.msra.mxu0 0.0
        %708 = vmatprep.subr.mxu0 0.0
        %709 = vmatpush1.xpose.msra.mxu0 0.0
        %710 = vmatprep.subr.mxu0 0.0
        %711 = vmatpush1.xpose.msra.mxu0 0.0
        %712 = vmatprep.subr.mxu0 0.0
        %713 = vmatpush1.xpose.msra.mxu0 0.0
        %714 = vmatprep.subr.mxu0 0.0
        %715 = vmatpush1.xpose.msra.mxu0 0.0
        %716 = vmatprep.subr.mxu0 0.0
        %717 = vmatpush1.xpose.msra.mxu0 0.0
        %718 = vmatprep.subr.mxu0 0.0
        %719 = vmatpush1.xpose.msra.mxu0 0.0
        %720 = vmatprep.subr.mxu0 0.0
        %721 = vmatpush1.xpose.msra.mxu0 0.0
        %722 = vmatprep.subr.mxu0 0.0
        %723 = vmatpush1.xpose.msra.mxu0 0.0
        %724 = vmatprep.subr.mxu0 0.0
        %725 = vmatpush1.xpose.msra.mxu0 0.0
        %726 = vmatprep.subr.mxu0 0.0
        %727 = vmatpush1.xpose.msra.mxu0 0.0
        %728 = vmatprep.subr.mxu0 0.0
        %729 = vmatpush1.xpose.msra.mxu0 0.0
        %730 = vmatprep.subr.mxu0 0.0
        %731 = vmatpush1.xpose.msra.mxu0 0.0
        %732 = vmatprep.subr.mxu0 0.0
        %733 = vmatpush1.xpose.msra.mxu0 0.0
        %734 = vmatprep.subr.mxu0 0.0
        %735 = vmatpush1.xpose.msra.mxu0 0.0
        %736 = vmatprep.subr.mxu0 0.0
        %737 = vmatpush1.xpose.msra.mxu0 0.0
        %738 = vmatprep.subr.mxu0 0.0
        %739 = vmatpush1.xpose.msra.mxu0 0.0
        %740 = vmatprep.mubr.f32.mxu0 0.0
        %741 = vmatmul.mubr.f32.gmra.mrb[0].mxu0 %v668
        %v742 = vpop.f32.mrb[0].mxu0
        %v743 = vadd.f32 0.0, %v742
        %v744 = vpop.f32.mrb[0].mxu0
        %745 = vmatprep.mubr.f32.mxu0 0.0
        %746 = vmatmul.mubr.f32.gmra.mrb[0].mxu0 %v671
        %v747 = vpop.f32.mrb[0].mxu0
        %v748 = vadd.f32 0.0, %v747
        %v749 = vpop.f32.mrb[0].mxu0
        %750 = vdwg.mxu0
        %v751 = vsel %vm666, %v743, -inf
        %752 = vmax.xlane.f32.xlu0 %v751
        %v753 = vpop.xlane.xlu0 %752
        %v754 = vsel %vm666, %v748, -inf
        %755 = vmax.xlane.f32.xlu0 %v754
        %v756 = vpop.xlane.xlu0 %755
        %v757 = vsub.f32 %v743, %v753
        %v758 = vsub.f32 %v748, %v756
        %v759 = vmul.f32 %v757, 1.442695
        %v760 = vpow.pop %v759
        %v761 = vmul.f32 %v758, 1.442695
        %v762 = vpow.pop %v761
        %v763 = vsel %vm666, %v760, 0.0
        %764 = vadd.xlane.f32.xlu0 %v763
        %v765 = vpop.xlane.xlu0 %764
        %v766 = vsel %vm666, %v762, 0.0
        %767 = vadd.xlane.f32.xlu0 %v766
        %v768 = vpop.xlane.xlu0 %767
        %v769 = vrcp.pop %v765
        %v770 = vrcp.pop %v768
        %v771 = vmul.f32 %v760, %v769
        %v772 = vmul.f32 %v762, %v770
        %v774 = vsel %vm666, %v771, 0
        %v777 = vsel %vm666, %v772, 0
        %779 = vmatprep.subr.mxu0 0.0
        %780 = vmatpush1.msra.mxu0 %v663
        %781 = vmatprep.subr.mxu0 0.0
        %782 = vmatpush1.msra.mxu0 0.0
        %783 = vmatprep.subr.mxu0 0.0
        %784 = vmatpush1.msra.mxu0 0.0
        %785 = vmatprep.subr.mxu0 0.0
        %786 = vmatpush1.msra.mxu0 0.0
        %787 = vmatprep.subr.mxu0 0.0
        %788 = vmatpush1.msra.mxu0 0.0
        %789 = vmatprep.subr.mxu0 0.0
        %790 = vmatpush1.msra.mxu0 0.0
        %791 = vmatprep.subr.mxu0 0.0
        %792 = vmatpush1.msra.mxu0 0.0
        %793 = vmatprep.subr.mxu0 0.0
        %794 = vmatpush1.msra.mxu0 0.0
        %795 = vmatprep.subr.mxu0 0.0
        %796 = vmatpush1.msra.mxu0 0.0
        %797 = vmatprep.subr.mxu0 0.0
        %798 = vmatpush1.msra.mxu0 0.0
        %799 = vmatprep.subr.mxu0 0.0
        %800 = vmatpush1.msra.mxu0 0.0
        %801 = vmatprep.subr.mxu0 0.0
        %802 = vmatpush1.msra.mxu0 0.0
        %803 = vmatprep.subr.mxu0 0.0
        %804 = vmatpush1.msra.mxu0 0.0
        %805 = vmatprep.subr.mxu0 0.0
        %806 = vmatpush1.msra.mxu0 0.0
        %807 = vmatprep.subr.mxu0 0.0
        %808 = vmatpush1.msra.mxu0 0.0
        %809 = vmatprep.subr.mxu0 0.0
        %810 = vmatpush1.msra.mxu0 0.0
        %811 = vmatprep.subr.mxu0 0.0
        %812 = vmatpush1.msra.mxu0 0.0
        %813 = vmatprep.subr.mxu0 0.0
        %814 = vmatpush1.msra.mxu0 0.0
        %815 = vmatprep.subr.mxu0 0.0
        %816 = vmatpush1.msra.mxu0 0.0
        %817 = vmatprep.subr.mxu0 0.0
        %818 = vmatpush1.msra.mxu0 0.0
        %819 = vmatprep.subr.mxu0 0.0
        %820 = vmatpush1.msra.mxu0 0.0
        %821 = vmatprep.subr.mxu0 0.0
        %822 = vmatpush1.msra.mxu0 0.0
        %823 = vmatprep.subr.mxu0 0.0
        %824 = vmatpush1.msra.mxu0 0.0
        %825 = vmatprep.subr.mxu0 0.0
        %826 = vmatpush1.msra.mxu0 0.0
        %827 = vmatprep.subr.mxu0 0.0
        %828 = vmatpush1.msra.mxu0 0.0
        %829 = vmatprep.subr.mxu0 0.0
        %830 = vmatpush1.msra.mxu0 0.0
        %831 = vmatprep.subr.mxu0 0.0
        %832 = vmatpush1.msra.mxu0 0.0
        %833 = vmatprep.subr.mxu0 0.0
        %834 = vmatpush1.msra.mxu0 0.0
        %835 = vmatprep.subr.mxu0 0.0
        %836 = vmatpush1.msra.mxu0 0.0
        %837 = vmatprep.subr.mxu0 0.0
        %838 = vmatpush1.msra.mxu0 0.0
        %839 = vmatprep.subr.mxu0 0.0
        %840 = vmatpush1.msra.mxu0 0.0
        %841 = vmatprep.subr.mxu0 0.0
        %842 = vmatpush1.msra.mxu0 0.0
        %843 = vmatprep.mubr.f32.mxu0 0.0
        %844 = vmatmul.mubr.f32.gmra.mrb[0].mxu0 %v774
        %v845 = vpop.f32.mrb[0].mxu0
        %v846 = vadd.f32 0.0, %v845
        %v847 = vpop.f32.mrb[0].mxu0
        %848 = vmatprep.mubr.f32.mxu0 0.0
        %849 = vmatmul.mubr.f32.gmra.mrb[0].mxu0 %v777
        %v850 = vpop.f32.mrb[0].mxu0
        %v851 = vadd.f32 0.0, %v850
        %v852 = vpop.f32.mrb[0].mxu0
        %853 = vdwg.mxu0
        %v854 = vld [vmem:[%s8] sm:$0xff]
        %s855 = scalar_lea.vmem %s2, 32
        %v856 = vld [vmem:[%s855] sm:$0xff]
        %v857 = vld [vmem:[%s855 + $0x8] sm:$0xff]
        %v858 = vld [vmem:[%s855 + $0x10] sm:$0xff]
        %v859 = vld [vmem:[%s855 + $0x18] sm:$0xff]
        %s860 = scalar_lea.vmem %s3, 1
        %v861 = vld [vmem:[%s860] sm:$0x1]
        %v863 = vlaneseq
        %v864 = vshrl.u32 %v863, 7
        %v865 = vsub.s32 0, %v864
        %v866 = vrot.slane %v861, %v865
        %868 = vmatprep.subr.mxu0 0.0
        %869 = vmatpush1.msra.mxu0 %v856
        %870 = vmatprep.subr.mxu0 0.0
        %871 = vmatpush1.msra.mxu0 %v857
        %872 = vmatprep.subr.mxu0 0.0
        %873 = vmatpush1.msra.mxu0 %v858
        %874 = vmatprep.subr.mxu0 0.0
        %875 = vmatpush1.msra.mxu0 %v859
        %876 = vmatprep.subr.mxu0 0.0
        %877 = vmatpush1.msra.mxu0 0.0
        %878 = vmatprep.subr.mxu0 0.0
        %879 = vmatpush1.msra.mxu0 0.0
        %880 = vmatprep.subr.mxu0 0.0
        %881 = vmatpush1.msra.mxu0 0.0
        %882 = vmatprep.subr.mxu0 0.0
        %883 = vmatpush1.msra.mxu0 0.0
        %884 = vmatprep.subr.mxu0 0.0
        %885 = vmatpush1.msra.mxu0 0.0
        %886 = vmatprep.subr.mxu0 0.0
        %887 = vmatpush1.msra.mxu0 0.0
        %888 = vmatprep.subr.mxu0 0.0
        %889 = vmatpush1.msra.mxu0 0.0
        %890 = vmatprep.subr.mxu0 0.0
        %891 = vmatpush1.msra.mxu0 0.0
        %892 = vmatprep.subr.mxu0 0.0
        %893 = vmatpush1.msra.mxu0 0.0
        %894 = vmatprep.subr.mxu0 0.0
        %895 = vmatpush1.msra.mxu0 0.0
        %896 = vmatprep.subr.mxu0 0.0
        %897 = vmatpush1.msra.mxu0 0.0
        %898 = vmatprep.subr.mxu0 0.0
        %899 = vmatpush1.msra.mxu0 0.0
        %900 = vmatprep.subr.mxu0 0.0
        %901 = vmatpush1.msra.mxu0 0.0
        %902 = vmatprep.subr.mxu0 0.0
        %903 = vmatpush1.msra.mxu0 0.0
        %904 = vmatprep.subr.mxu0 0.0
        %905 = vmatpush1.msra.mxu0 0.0
        %906 = vmatprep.subr.mxu0 0.0
        %907 = vmatpush1.msra.mxu0 0.0
        %908 = vmatprep.subr.mxu0 0.0
        %909 = vmatpush1.msra.mxu0 0.0
        %910 = vmatprep.subr.mxu0 0.0
        %911 = vmatpush1.msra.mxu0 0.0
        %912 = vmatprep.subr.mxu0 0.0
        %913 = vmatpush1.msra.mxu0 0.0
        %914 = vmatprep.subr.mxu0 0.0
        %915 = vmatpush1.msra.mxu0 0.0
        %916 = vmatprep.subr.mxu0 0.0
        %917 = vmatpush1.msra.mxu0 0.0
        %918 = vmatprep.subr.mxu0 0.0
        %919 = vmatpush1.msra.mxu0 0.0
        %920 = vmatprep.subr.mxu0 0.0
        %921 = vmatpush1.msra.mxu0 0.0
        %922 = vmatprep.subr.mxu0 0.0
        %923 = vmatpush1.msra.mxu0 0.0
        %924 = vmatprep.subr.mxu0 0.0
        %925 = vmatpush1.msra.mxu0 0.0
        %926 = vmatprep.subr.mxu0 0.0
        %927 = vmatpush1.msra.mxu0 0.0
        %928 = vmatprep.subr.mxu0 0.0
        %929 = vmatpush1.msra.mxu0 0.0
        %930 = vmatprep.subr.mxu0 0.0
        %931 = vmatpush1.msra.mxu0 0.0
        %932 = vmatprep.mubr.f32.mxu0 0.0
        %933 = vmatmul.mubr.f32.gmra.mrb[0].mxu0 %v422
        %v934 = vpop.f32.mrb[0].mxu0
        %v935 = vadd.f32 %v866, %v934
        %v936 = vpop.f32.mrb[0].mxu0
        %937 = vmatprep.mubr.f32.mxu0 0.0
        %938 = vmatmul.mubr.f32.gmra.mrb[0].mxu0 %v425
        %v939 = vpop.f32.mrb[0].mxu0
        %v940 = vadd.f32 %v866, %v939
        %v941 = vpop.f32.mrb[0].mxu0
        %942 = vdwg.mxu0
        %s943 = scalar_lea.vmem %s4, 24
        %v944 = vld [vmem:[%s943] sm:$0xff]
        %v945 = vld [vmem:[%s943 + $0x8] sm:$0xff]
        %v946 = vld [vmem:[%s943 + $0x10] sm:$0xff]
        %s947 = scalar_lea.vmem %s5, 1
        %v948 = vld [vmem:[%s947] sm:$0x1]
        %v950 = vlaneseq
        %v951 = vshrl.u32 %v950, 7
        %v952 = vsub.s32 0, %v951
        %v953 = vrot.slane %v948, %v952
        %955 = vmatprep.subr.mxu0 0.0
        %956 = vmatpush1.msra.mxu0 %v944
        %957 = vmatprep.subr.mxu0 0.0
        %958 = vmatpush1.msra.mxu0 %v945
        %959 = vmatprep.subr.mxu0 0.0
        %960 = vmatpush1.msra.mxu0 %v946
        %961 = vmatprep.subr.mxu0 0.0
        %962 = vmatpush1.msra.mxu0 0.0
        %963 = vmatprep.subr.mxu0 0.0
        %964 = vmatpush1.msra.mxu0 0.0
        %965 = vmatprep.subr.mxu0 0.0
        %966 = vmatpush1.msra.mxu0 0.0
        %967 = vmatprep.subr.mxu0 0.0
        %968 = vmatpush1.msra.mxu0 0.0
        %969 = vmatprep.subr.mxu0 0.0
        %970 = vmatpush1.msra.mxu0 0.0
        %971 = vmatprep.subr.mxu0 0.0
        %972 = vmatpush1.msra.mxu0 0.0
        %973 = vmatprep.subr.mxu0 0.0
        %974 = vmatpush1.msra.mxu0 0.0
        %975 = vmatprep.subr.mxu0 0.0
        %976 = vmatpush1.msra.mxu0 0.0
        %977 = vmatprep.subr.mxu0 0.0
        %978 = vmatpush1.msra.mxu0 0.0
        %979 = vmatprep.subr.mxu0 0.0
        %980 = vmatpush1.msra.mxu0 0.0
        %981 = vmatprep.subr.mxu0 0.0
        %982 = vmatpush1.msra.mxu0 0.0
        %983 = vmatprep.subr.mxu0 0.0
        %984 = vmatpush1.msra.mxu0 0.0
        %985 = vmatprep.subr.mxu0 0.0
        %986 = vmatpush1.msra.mxu0 0.0
        %987 = vmatprep.subr.mxu0 0.0
        %988 = vmatpush1.msra.mxu0 0.0
        %989 = vmatprep.subr.mxu0 0.0
        %990 = vmatpush1.msra.mxu0 0.0
        %991 = vmatprep.subr.mxu0 0.0
        %992 = vmatpush1.msra.mxu0 0.0
        %993 = vmatprep.subr.mxu0 0.0
        %994 = vmatpush1.msra.mxu0 0.0
        %995 = vmatprep.subr.mxu0 0.0
        %996 = vmatpush1.msra.mxu0 0.0
        %997 = vmatprep.subr.mxu0 0.0
        %998 = vmatpush1.msra.mxu0 0.0
        %999 = vmatprep.subr.mxu0 0.0
        %1000 = vmatpush1.msra.mxu0 0.0
        %1001 = vmatprep.subr.mxu0 0.0
        %1002 = vmatpush1.msra.mxu0 0.0
        %1003 = vmatprep.subr.mxu0 0.0
        %1004 = vmatpush1.msra.mxu0 0.0
        %1005 = vmatprep.subr.mxu0 0.0
        %1006 = vmatpush1.msra.mxu0 0.0
        %1007 = vmatprep.subr.mxu0 0.0
        %1008 = vmatpush1.msra.mxu0 0.0
        %1009 = vmatprep.subr.mxu0 0.0
        %1010 = vmatpush1.msra.mxu0 0.0
        %1011 = vmatprep.subr.mxu0 0.0
        %1012 = vmatpush1.msra.mxu0 0.0
        %1013 = vmatprep.subr.mxu0 0.0
        %1014 = vmatpush1.msra.mxu0 0.0
        %1015 = vmatprep.subr.mxu0 0.0
        %1016 = vmatpush1.msra.mxu0 0.0
        %1017 = vmatprep.subr.mxu0 0.0
        %1018 = vmatpush1.msra.mxu0 0.0
        %1019 = vmatprep.mubr.f32.mxu0 0.0
        %1020 = vmatmul.mubr.f32.gmra.mrb[0].mxu0 %v514
        %v1021 = vpop.f32.mrb[0].mxu0
        %v1022 = vadd.f32 %v953, %v1021
        %v1023 = vpop.f32.mrb[0].mxu0
        %1024 = vdwg.mxu0
        %s1025 = scalar_lea.vmem %s6, 24
        %v1026 = vld [vmem:[%s1025] sm:$0xff]
        %v1027 = vld [vmem:[%s1025 + $0x8] sm:$0xff]
        %v1028 = vld [vmem:[%s1025 + $0x10] sm:$0xff]
        %s1029 = scalar_lea.vmem %s7, 1
        %v1030 = vld [vmem:[%s1029] sm:$0x1]
        %v1032 = vlaneseq
        %v1033 = vshrl.u32 %v1032, 7
        %v1034 = vsub.s32 0, %v1033
        %v1035 = vrot.slane %v1030, %v1034
        %1037 = vmatprep.subr.mxu0 0.0
        %1038 = vmatpush1.msra.mxu0 %v1026
        %1039 = vmatprep.subr.mxu0 0.0
        %1040 = vmatpush1.msra.mxu0 %v1027
        %1041 = vmatprep.subr.mxu0 0.0
        %1042 = vmatpush1.msra.mxu0 %v1028
        %1043 = vmatprep.subr.mxu0 0.0
        %1044 = vmatpush1.msra.mxu0 0.0
        %1045 = vmatprep.subr.mxu0 0.0
        %1046 = vmatpush1.msra.mxu0 0.0
        %1047 = vmatprep.subr.mxu0 0.0
        %1048 = vmatpush1.msra.mxu0 0.0
        %1049 = vmatprep.subr.mxu0 0.0
        %1050 = vmatpush1.msra.mxu0 0.0
        %1051 = vmatprep.subr.mxu0 0.0
        %1052 = vmatpush1.msra.mxu0 0.0
        %1053 = vmatprep.subr.mxu0 0.0
        %1054 = vmatpush1.msra.mxu0 0.0
        %1055 = vmatprep.subr.mxu0 0.0
        %1056 = vmatpush1.msra.mxu0 0.0
        %1057 = vmatprep.subr.mxu0 0.0
        %1058 = vmatpush1.msra.mxu0 0.0
        %1059 = vmatprep.subr.mxu0 0.0
        %1060 = vmatpush1.msra.mxu0 0.0
        %1061 = vmatprep.subr.mxu0 0.0
        %1062 = vmatpush1.msra.mxu0 0.0
        %1063 = vmatprep.subr.mxu0 0.0
        %1064 = vmatpush1.msra.mxu0 0.0
        %1065 = vmatprep.subr.mxu0 0.0
        %1066 = vmatpush1.msra.mxu0 0.0
        %1067 = vmatprep.subr.mxu0 0.0
        %1068 = vmatpush1.msra.mxu0 0.0
        %1069 = vmatprep.subr.mxu0 0.0
        %1070 = vmatpush1.msra.mxu0 0.0
        %1071 = vmatprep.subr.mxu0 0.0
        %1072 = vmatpush1.msra.mxu0 0.0
        %1073 = vmatprep.subr.mxu0 0.0
        %1074 = vmatpush1.msra.mxu0 0.0
        %1075 = vmatprep.subr.mxu0 0.0
        %1076 = vmatpush1.msra.mxu0 0.0
        %1077 = vmatprep.subr.mxu0 0.0
        %1078 = vmatpush1.msra.mxu0 0.0
        %1079 = vmatprep.subr.mxu0 0.0
        %1080 = vmatpush1.msra.mxu0 0.0
        %1081 = vmatprep.subr.mxu0 0.0
        %1082 = vmatpush1.msra.mxu0 0.0
        %1083 = vmatprep.subr.mxu0 0.0
        %1084 = vmatpush1.msra.mxu0 0.0
        %1085 = vmatprep.subr.mxu0 0.0
        %1086 = vmatpush1.msra.mxu0 0.0
        %1087 = vmatprep.subr.mxu0 0.0
        %1088 = vmatpush1.msra.mxu0 0.0
        %1089 = vmatprep.subr.mxu0 0.0
        %1090 = vmatpush1.msra.mxu0 0.0
        %1091 = vmatprep.subr.mxu0 0.0
        %1092 = vmatpush1.msra.mxu0 0.0
        %1093 = vmatprep.subr.mxu0 0.0
        %1094 = vmatpush1.msra.mxu0 0.0
        %1095 = vmatprep.subr.mxu0 0.0
        %1096 = vmatpush1.msra.mxu0 0.0
        %1097 = vmatprep.subr.mxu0 0.0
        %1098 = vmatpush1.msra.mxu0 0.0
        %1099 = vmatprep.subr.mxu0 0.0
        %1100 = vmatpush1.msra.mxu0 0.0
        %1101 = vmatprep.mubr.f32.mxu0 0.0
        %1102 = vmatmul.mubr.f32.gmra.mrb[0].mxu0 %v514
        %v1103 = vpop.f32.mrb[0].mxu0
        %v1104 = vadd.f32 %v1035, %v1103
        %v1105 = vpop.f32.mrb[0].mxu0
        %1106 = vdwg.mxu0
        %v1108 = vsel %vm666, %v935, 0
        %v1111 = vsel %vm666, %v940, 0
        %v1114 = vsel %vm666, %v1022, 0
        %1116 = vmatprep.subr.mxu0 0.0
        %1117 = vmatpush1.xpose.msra.mxu0 %v1114
        %1118 = vmatprep.subr.mxu0 0.0
        %1119 = vmatpush1.xpose.msra.mxu0 0.0
        %1120 = vmatprep.subr.mxu0 0.0
        %1121 = vmatpush1.xpose.msra.mxu0 0.0
        %1122 = vmatprep.subr.mxu0 0.0
        %1123 = vmatpush1.xpose.msra.mxu0 0.0
        %1124 = vmatprep.subr.mxu0 0.0
        %1125 = vmatpush1.xpose.msra.mxu0 0.0
        %1126 = vmatprep.subr.mxu0 0.0
        %1127 = vmatpush1.xpose.msra.mxu0 0.0
        %1128 = vmatprep.subr.mxu0 0.0
        %1129 = vmatpush1.xpose.msra.mxu0 0.0
        %1130 = vmatprep.subr.mxu0 0.0
        %1131 = vmatpush1.xpose.msra.mxu0 0.0
        %1132 = vmatprep.subr.mxu0 0.0
        %1133 = vmatpush1.xpose.msra.mxu0 0.0
        %1134 = vmatprep.subr.mxu0 0.0
        %1135 = vmatpush1.xpose.msra.mxu0 0.0
        %1136 = vmatprep.subr.mxu0 0.0
        %1137 = vmatpush1.xpose.msra.mxu0 0.0
        %1138 = vmatprep.subr.mxu0 0.0
        %1139 = vmatpush1.xpose.msra.mxu0 0.0
        %1140 = vmatprep.subr.mxu0 0.0
        %1141 = vmatpush1.xpose.msra.mxu0 0.0
        %1142 = vmatprep.subr.mxu0 0.0
        %1143 = vmatpush1.xpose.msra.mxu0 0.0
        %1144 = vmatprep.subr.mxu0 0.0
        %1145 = vmatpush1.xpose.msra.mxu0 0.0
        %1146 = vmatprep.subr.mxu0 0.0
        %1147 = vmatpush1.xpose.msra.mxu0 0.0
        %1148 = vmatprep.subr.mxu0 0.0
        %1149 = vmatpush1.xpose.msra.mxu0 0.0
        %1150 = vmatprep.subr.mxu0 0.0
        %1151 = vmatpush1.xpose.msra.mxu0 0.0
        %1152 = vmatprep.subr.mxu0 0.0
        %1153 = vmatpush1.xpose.msra.mxu0 0.0
        %1154 = vmatprep.subr.mxu0 0.0
        %1155 = vmatpush1.xpose.msra.mxu0 0.0
        %1156 = vmatprep.subr.mxu0 0.0
        %1157 = vmatpush1.xpose.msra.mxu0 0.0
        %1158 = vmatprep.subr.mxu0 0.0
        %1159 = vmatpush1.xpose.msra.mxu0 0.0
        %1160 = vmatprep.subr.mxu0 0.0
        %1161 = vmatpush1.xpose.msra.mxu0 0.0
        %1162 = vmatprep.subr.mxu0 0.0
        %1163 = vmatpush1.xpose.msra.mxu0 0.0
        %1164 = vmatprep.subr.mxu0 0.0
        %1165 = vmatpush1.xpose.msra.mxu0 0.0
        %1166 = vmatprep.subr.mxu0 0.0
        %1167 = vmatpush1.xpose.msra.mxu0 0.0
        %1168 = vmatprep.subr.mxu0 0.0
        %1169 = vmatpush1.xpose.msra.mxu0 0.0
        %1170 = vmatprep.subr.mxu0 0.0
        %1171 = vmatpush1.xpose.msra.mxu0 0.0
        %1172 = vmatprep.subr.mxu0 0.0
        %1173 = vmatpush1.xpose.msra.mxu0 0.0
        %1174 = vmatprep.subr.mxu0 0.0
        %1175 = vmatpush1.xpose.msra.mxu0 0.0
        %1176 = vmatprep.subr.mxu0 0.0
        %1177 = vmatpush1.xpose.msra.mxu0 0.0
        %1178 = vmatprep.subr.mxu0 0.0
        %1179 = vmatpush1.xpose.msra.mxu0 0.0
        %1180 = vmatprep.mubr.f32.mxu0 0.0
        %1181 = vmatmul.mubr.f32.gmra.mrb[0].mxu0 %v1108
        %v1182 = vpop.f32.mrb[0].mxu0
        %v1183 = vadd.f32 0.0, %v1182
        %v1184 = vpop.f32.mrb[0].mxu0
        %1185 = vmatprep.mubr.f32.mxu0 0.0
        %1186 = vmatmul.mubr.f32.gmra.mrb[0].mxu0 %v1111
        %v1187 = vpop.f32.mrb[0].mxu0
        %v1188 = vadd.f32 0.0, %v1187
        %v1189 = vpop.f32.mrb[0].mxu0
        %1190 = vdwg.mxu0
        %v1191 = vsel %vm666, %v1183, -inf
        %1192 = vmax.xlane.f32.xlu0 %v1191
        %v1193 = vpop.xlane.xlu0 %1192
        %v1194 = vsel %vm666, %v1188, -inf
        %1195 = vmax.xlane.f32.xlu0 %v1194
        %v1196 = vpop.xlane.xlu0 %1195
        %v1197 = vsub.f32 %v1183, %v1193
        %v1198 = vsub.f32 %v1188, %v1196
        %v1199 = vmul.f32 %v1197, 1.442695
        %v1200 = vpow.pop %v1199
        %v1201 = vmul.f32 %v1198, 1.442695
        %v1202 = vpow.pop %v1201
        %v1203 = vsel %vm666, %v1200, 0.0
        %1204 = vadd.xlane.f32.xlu0 %v1203
        %v1205 = vpop.xlane.xlu0 %1204
        %v1206 = vsel %vm666, %v1202, 0.0
        %1207 = vadd.xlane.f32.xlu0 %v1206
        %v1208 = vpop.xlane.xlu0 %1207
        %v1209 = vrcp.pop %v1205
        %v1210 = vrcp.pop %v1208
        %v1211 = vmul.f32 %v1200, %v1209
        %v1212 = vmul.f32 %v1202, %v1210
        %v1214 = vsel %vm666, %v1211, 0
        %v1217 = vsel %vm666, %v1212, 0
        %1219 = vmatprep.subr.mxu0 0.0
        %1220 = vmatpush1.msra.mxu0 %v1104
        %1221 = vmatprep.subr.mxu0 0.0
        %1222 = vmatpush1.msra.mxu0 0.0
        %1223 = vmatprep.subr.mxu0 0.0
        %1224 = vmatpush1.msra.mxu0 0.0
        %1225 = vmatprep.subr.mxu0 0.0
        %1226 = vmatpush1.msra.mxu0 0.0
        %1227 = vmatprep.subr.mxu0 0.0
        %1228 = vmatpush1.msra.mxu0 0.0
        %1229 = vmatprep.subr.mxu0 0.0
        %1230 = vmatpush1.msra.mxu0 0.0
        %1231 = vmatprep.subr.mxu0 0.0
        %1232 = vmatpush1.msra.mxu0 0.0
        %1233 = vmatprep.subr.mxu0 0.0
        %1234 = vmatpush1.msra.mxu0 0.0
        %1235 = vmatprep.subr.mxu0 0.0
        %1236 = vmatpush1.msra.mxu0 0.0
        %1237 = vmatprep.subr.mxu0 0.0
        %1238 = vmatpush1.msra.mxu0 0.0
        %1239 = vmatprep.subr.mxu0 0.0
        %1240 = vmatpush1.msra.mxu0 0.0
        %1241 = vmatprep.subr.mxu0 0.0
        %1242 = vmatpush1.msra.mxu0 0.0
        %1243 = vmatprep.subr.mxu0 0.0
        %1244 = vmatpush1.msra.mxu0 0.0
        %1245 = vmatprep.subr.mxu0 0.0
        %1246 = vmatpush1.msra.mxu0 0.0
        %1247 = vmatprep.subr.mxu0 0.0
        %1248 = vmatpush1.msra.mxu0 0.0
        %1249 = vmatprep.subr.mxu0 0.0
        %1250 = vmatpush1.msra.mxu0 0.0
        %1251 = vmatprep.subr.mxu0 0.0
        %1252 = vmatpush1.msra.mxu0 0.0
        %1253 = vmatprep.subr.mxu0 0.0
        %1254 = vmatpush1.msra.mxu0 0.0
        %1255 = vmatprep.subr.mxu0 0.0
        %1256 = vmatpush1.msra.mxu0 0.0
        %1257 = vmatprep.subr.mxu0 0.0
        %1258 = vmatpush1.msra.mxu0 0.0
        %1259 = vmatprep.subr.mxu0 0.0
        %1260 = vmatpush1.msra.mxu0 0.0
        %1261 = vmatprep.subr.mxu0 0.0
        %1262 = vmatpush1.msra.mxu0 0.0
        %1263 = vmatprep.subr.mxu0 0.0
        %1264 = vmatpush1.msra.mxu0 0.0
        %1265 = vmatprep.subr.mxu0 0.0
        %1266 = vmatpush1.msra.mxu0 0.0
        %1267 = vmatprep.subr.mxu0 0.0
        %1268 = vmatpush1.msra.mxu0 0.0
        %1269 = vmatprep.subr.mxu0 0.0
        %1270 = vmatpush1.msra.mxu0 0.0
        %1271 = vmatprep.subr.mxu0 0.0
        %1272 = vmatpush1.msra.mxu0 0.0
        %1273 = vmatprep.subr.mxu0 0.0
        %1274 = vmatpush1.msra.mxu0 0.0
        %1275 = vmatprep.subr.mxu0 0.0
        %1276 = vmatpush1.msra.mxu0 0.0
        %1277 = vmatprep.subr.mxu0 0.0
        %1278 = vmatpush1.msra.mxu0 0.0
        %1279 = vmatprep.subr.mxu0 0.0
        %1280 = vmatpush1.msra.mxu0 0.0
        %1281 = vmatprep.subr.mxu0 0.0
        %1282 = vmatpush1.msra.mxu0 0.0
        %1283 = vmatprep.mubr.f32.mxu0 0.0
        %1284 = vmatmul.mubr.f32.gmra.mrb[0].mxu0 %v1214
        %v1285 = vpop.f32.mrb[0].mxu0
        %v1286 = vadd.f32 0.0, %v1285
        %v1287 = vpop.f32.mrb[0].mxu0
        %1288 = vmatprep.mubr.f32.mxu0 0.0
        %1289 = vmatmul.mubr.f32.gmra.mrb[0].mxu0 %v1217
        %v1290 = vpop.f32.mrb[0].mxu0
        %v1291 = vadd.f32 0.0, %v1290
        %v1292 = vpop.f32.mrb[0].mxu0
        %1293 = vdwg.mxu0
        %s1294 = scalar_lea.vmem %s8, 8
        %v1295 = vld [vmem:[%s1294] sm:$0xff]
        %v1297 = vsel %vm666, %v1286, 0
        %v1300 = vsel %vm666, %v1291, 0
        %1302 = vmatprep.subr.mxu0 0.0
        %1303 = vmatpush1.msra.mxu0 %v1295
        %1304 = vmatprep.subr.mxu0 0.0
        %1305 = vmatpush1.msra.mxu0 0.0
        %1306 = vmatprep.subr.mxu0 0.0
        %1307 = vmatpush1.msra.mxu0 0.0
        %1308 = vmatprep.subr.mxu0 0.0
        %1309 = vmatpush1.msra.mxu0 0.0
        %1310 = vmatprep.subr.mxu0 0.0
        %1311 = vmatpush1.msra.mxu0 0.0
        %1312 = vmatprep.subr.mxu0 0.0
        %1313 = vmatpush1.msra.mxu0 0.0
        %1314 = vmatprep.subr.mxu0 0.0
        %1315 = vmatpush1.msra.mxu0 0.0
        %1316 = vmatprep.subr.mxu0 0.0
        %1317 = vmatpush1.msra.mxu0 0.0
        %1318 = vmatprep.subr.mxu0 0.0
        %1319 = vmatpush1.msra.mxu0 0.0
        %1320 = vmatprep.subr.mxu0 0.0
        %1321 = vmatpush1.msra.mxu0 0.0
        %1322 = vmatprep.subr.mxu0 0.0
        %1323 = vmatpush1.msra.mxu0 0.0
        %1324 = vmatprep.subr.mxu0 0.0
        %1325 = vmatpush1.msra.mxu0 0.0
        %1326 = vmatprep.subr.mxu0 0.0
        %1327 = vmatpush1.msra.mxu0 0.0
        %1328 = vmatprep.subr.mxu0 0.0
        %1329 = vmatpush1.msra.mxu0 0.0
        %1330 = vmatprep.subr.mxu0 0.0
        %1331 = vmatpush1.msra.mxu0 0.0
        %1332 = vmatprep.subr.mxu0 0.0
        %1333 = vmatpush1.msra.mxu0 0.0
        %1334 = vmatprep.subr.mxu0 0.0
        %1335 = vmatpush1.msra.mxu0 0.0
        %1336 = vmatprep.subr.mxu0 0.0
        %1337 = vmatpush1.msra.mxu0 0.0
        %1338 = vmatprep.subr.mxu0 0.0
        %1339 = vmatpush1.msra.mxu0 0.0
        %1340 = vmatprep.subr.mxu0 0.0
        %1341 = vmatpush1.msra.mxu0 0.0
        %1342 = vmatprep.subr.mxu0 0.0
        %1343 = vmatpush1.msra.mxu0 0.0
        %1344 = vmatprep.subr.mxu0 0.0
        %1345 = vmatpush1.msra.mxu0 0.0
        %1346 = vmatprep.subr.mxu0 0.0
        %1347 = vmatpush1.msra.mxu0 0.0
        %1348 = vmatprep.subr.mxu0 0.0
        %1349 = vmatpush1.msra.mxu0 0.0
        %1350 = vmatprep.subr.mxu0 0.0
        %1351 = vmatpush1.msra.mxu0 0.0
        %1352 = vmatprep.subr.mxu0 0.0
        %1353 = vmatpush1.msra.mxu0 0.0
        %1354 = vmatprep.subr.mxu0 0.0
        %1355 = vmatpush1.msra.mxu0 0.0
        %1356 = vmatprep.subr.mxu0 0.0
        %1357 = vmatpush1.msra.mxu0 0.0
        %1358 = vmatprep.subr.mxu0 0.0
        %1359 = vmatpush1.msra.mxu0 0.0
        %1360 = vmatprep.subr.mxu0 0.0
        %1361 = vmatpush1.msra.mxu0 0.0
        %1362 = vmatprep.subr.mxu0 0.0
        %1363 = vmatpush1.msra.mxu0 0.0
        %1364 = vmatprep.subr.mxu0 0.0
        %1365 = vmatpush1.msra.mxu0 0.0
        %1366 = vmatprep.mubr.f32.mxu0 0.0
        %1367 = vmatmul.mubr.f32.gmra.mrb[0].mxu0 %v1297
        %v1368 = vpop.f32.mrb[0].mxu0
        %v1369 = vadd.f32 0.0, %v1368
        %v1370 = vpop.f32.mrb[0].mxu0
        %1371 = vmatprep.mubr.f32.mxu0 0.0
        %1372 = vmatmul.mubr.f32.gmra.mrb[0].mxu0 %v1300
        %v1373 = vpop.f32.mrb[0].mxu0
        %v1374 = vadd.f32 0.0, %v1373
        %v1375 = vpop.f32.mrb[0].mxu0
        %1376 = vdwg.mxu0
        %v1378 = vsel %vm666, %v846, 0
        %v1381 = vsel %vm666, %v851, 0
        %1383 = vmatprep.subr.mxu0 0.0
        %1384 = vmatpush1.msra.mxu0 %v854
        %1385 = vmatprep.subr.mxu0 0.0
        %1386 = vmatpush1.msra.mxu0 0.0
        %1387 = vmatprep.subr.mxu0 0.0
        %1388 = vmatpush1.msra.mxu0 0.0
        %1389 = vmatprep.subr.mxu0 0.0
        %1390 = vmatpush1.msra.mxu0 0.0
        %1391 = vmatprep.subr.mxu0 0.0
        %1392 = vmatpush1.msra.mxu0 0.0
        %1393 = vmatprep.subr.mxu0 0.0
        %1394 = vmatpush1.msra.mxu0 0.0
        %1395 = vmatprep.subr.mxu0 0.0
        %1396 = vmatpush1.msra.mxu0 0.0
        %1397 = vmatprep.subr.mxu0 0.0
        %1398 = vmatpush1.msra.mxu0 0.0
        %1399 = vmatprep.subr.mxu0 0.0
        %1400 = vmatpush1.msra.mxu0 0.0
        %1401 = vmatprep.subr.mxu0 0.0
        %1402 = vmatpush1.msra.mxu0 0.0
        %1403 = vmatprep.subr.mxu0 0.0
        %1404 = vmatpush1.msra.mxu0 0.0
        %1405 = vmatprep.subr.mxu0 0.0
        %1406 = vmatpush1.msra.mxu0 0.0
        %1407 = vmatprep.subr.mxu0 0.0
        %1408 = vmatpush1.msra.mxu0 0.0
        %1409 = vmatprep.subr.mxu0 0.0
        %1410 = vmatpush1.msra.mxu0 0.0
        %1411 = vmatprep.subr.mxu0 0.0
        %1412 = vmatpush1.msra.mxu0 0.0
        %1413 = vmatprep.subr.mxu0 0.0
        %1414 = vmatpush1.msra.mxu0 0.0
        %1415 = vmatprep.subr.mxu0 0.0
        %1416 = vmatpush1.msra.mxu0 0.0
        %1417 = vmatprep.subr.mxu0 0.0
        %1418 = vmatpush1.msra.mxu0 0.0
        %1419 = vmatprep.subr.mxu0 0.0
        %1420 = vmatpush1.msra.mxu0 0.0
        %1421 = vmatprep.subr.mxu0 0.0
        %1422 = vmatpush1.msra.mxu0 0.0
        %1423 = vmatprep.subr.mxu0 0.0
        %1424 = vmatpush1.msra.mxu0 0.0
        %1425 = vmatprep.subr.mxu0 0.0
        %1426 = vmatpush1.msra.mxu0 0.0
        %1427 = vmatprep.subr.mxu0 0.0
        %1428 = vmatpush1.msra.mxu0 0.0
        %1429 = vmatprep.subr.mxu0 0.0
        %1430 = vmatpush1.msra.mxu0 0.0
        %1431 = vmatprep.subr.mxu0 0.0
        %1432 = vmatpush1.msra.mxu0 0.0
        %1433 = vmatprep.subr.mxu0 0.0
        %1434 = vmatpush1.msra.mxu0 0.0
        %1435 = vmatprep.subr.mxu0 0.0
        %1436 = vmatpush1.msra.mxu0 0.0
        %1437 = vmatprep.subr.mxu0 0.0
        %1438 = vmatpush1.msra.mxu0 0.0
        %1439 = vmatprep.subr.mxu0 0.0
        %1440 = vmatpush1.msra.mxu0 0.0
        %1441 = vmatprep.subr.mxu0 0.0
        %1442 = vmatpush1.msra.mxu0 0.0
        %1443 = vmatprep.subr.mxu0 0.0
        %1444 = vmatpush1.msra.mxu0 0.0
        %1445 = vmatprep.subr.mxu0 0.0
        %1446 = vmatpush1.msra.mxu0 0.0
        %1447 = vmatprep.mubr.f32.mxu0 0.0
        %1448 = vmatmul.mubr.f32.gmra.mrb[0].mxu0 %v1378
        %v1449 = vpop.f32.mrb[0].mxu0
        %v1450 = vadd.f32 %v1369, %v1449
        %v1451 = vpop.f32.mrb[0].mxu0
        %1452 = vmatprep.mubr.f32.mxu0 0.0
        %1453 = vmatmul.mubr.f32.gmra.mrb[0].mxu0 %v1381
        %v1454 = vpop.f32.mrb[0].mxu0
        %v1455 = vadd.f32 %v1374, %v1454
        %v1456 = vpop.f32.mrb[0].mxu0
        %1457 = vdwg.mxu0
        %s1458 = scalar_lea.vmem %s2, 64
        %v1459 = vld [vmem:[%s1458] sm:$0xff]
        %v1460 = vld [vmem:[%s1458 + $0x8] sm:$0xff]
        %v1461 = vld [vmem:[%s1458 + $0x10] sm:$0xff]
        %v1462 = vld [vmem:[%s1458 + $0x18] sm:$0xff]
        %s1463 = scalar_lea.vmem %s3, 2
        %v1464 = vld [vmem:[%s1463] sm:$0x1]
        %v1466 = vlaneseq
        %v1467 = vshrl.u32 %v1466, 7
        %v1468 = vsub.s32 0, %v1467
        %v1469 = vrot.slane %v1464, %v1468
        %1471 = vmatprep.subr.mxu0 0.0
        %1472 = vmatpush1.msra.mxu0 %v1459
        %1473 = vmatprep.subr.mxu0 0.0
        %1474 = vmatpush1.msra.mxu0 %v1460
        %1475 = vmatprep.subr.mxu0 0.0
        %1476 = vmatpush1.msra.mxu0 %v1461
        %1477 = vmatprep.subr.mxu0 0.0
        %1478 = vmatpush1.msra.mxu0 %v1462
        %1479 = vmatprep.subr.mxu0 0.0
        %1480 = vmatpush1.msra.mxu0 0.0
        %1481 = vmatprep.subr.mxu0 0.0
        %1482 = vmatpush1.msra.mxu0 0.0
        %1483 = vmatprep.subr.mxu0 0.0
        %1484 = vmatpush1.msra.mxu0 0.0
        %1485 = vmatprep.subr.mxu0 0.0
        %1486 = vmatpush1.msra.mxu0 0.0
        %1487 = vmatprep.subr.mxu0 0.0
        %1488 = vmatpush1.msra.mxu0 0.0
        %1489 = vmatprep.subr.mxu0 0.0
        %1490 = vmatpush1.msra.mxu0 0.0
        %1491 = vmatprep.subr.mxu0 0.0
        %1492 = vmatpush1.msra.mxu0 0.0
        %1493 = vmatprep.subr.mxu0 0.0
        %1494 = vmatpush1.msra.mxu0 0.0
        %1495 = vmatprep.subr.mxu0 0.0
        %1496 = vmatpush1.msra.mxu0 0.0
        %1497 = vmatprep.subr.mxu0 0.0
        %1498 = vmatpush1.msra.mxu0 0.0
        %1499 = vmatprep.subr.mxu0 0.0
        %1500 = vmatpush1.msra.mxu0 0.0
        %1501 = vmatprep.subr.mxu0 0.0
        %1502 = vmatpush1.msra.mxu0 0.0
        %1503 = vmatprep.subr.mxu0 0.0
        %1504 = vmatpush1.msra.mxu0 0.0
        %1505 = vmatprep.subr.mxu0 0.0
        %1506 = vmatpush1.msra.mxu0 0.0
        %1507 = vmatprep.subr.mxu0 0.0
        %1508 = vmatpush1.msra.mxu0 0.0
        %1509 = vmatprep.subr.mxu0 0.0
        %1510 = vmatpush1.msra.mxu0 0.0
        %1511 = vmatprep.subr.mxu0 0.0
        %1512 = vmatpush1.msra.mxu0 0.0
        %1513 = vmatprep.subr.mxu0 0.0
        %1514 = vmatpush1.msra.mxu0 0.0
        %1515 = vmatprep.subr.mxu0 0.0
        %1516 = vmatpush1.msra.mxu0 0.0
        %1517 = vmatprep.subr.mxu0 0.0
        %1518 = vmatpush1.msra.mxu0 0.0
        %1519 = vmatprep.subr.mxu0 0.0
        %1520 = vmatpush1.msra.mxu0 0.0
        %1521 = vmatprep.subr.mxu0 0.0
        %1522 = vmatpush1.msra.mxu0 0.0
        %1523 = vmatprep.subr.mxu0 0.0
        %1524 = vmatpush1.msra.mxu0 0.0
        %1525 = vmatprep.subr.mxu0 0.0
        %1526 = vmatpush1.msra.mxu0 0.0
        %1527 = vmatprep.subr.mxu0 0.0
        %1528 = vmatpush1.msra.mxu0 0.0
        %1529 = vmatprep.subr.mxu0 0.0
        %1530 = vmatpush1.msra.mxu0 0.0
        %1531 = vmatprep.subr.mxu0 0.0
        %1532 = vmatpush1.msra.mxu0 0.0
        %1533 = vmatprep.subr.mxu0 0.0
        %1534 = vmatpush1.msra.mxu0 0.0
        %1535 = vmatprep.mubr.f32.mxu0 0.0
        %1536 = vmatmul.mubr.f32.gmra.mrb[0].mxu0 %v422
        %v1537 = vpop.f32.mrb[0].mxu0
        %v1538 = vadd.f32 %v1469, %v1537
        %v1539 = vpop.f32.mrb[0].mxu0
        %1540 = vmatprep.mubr.f32.mxu0 0.0
        %1541 = vmatmul.mubr.f32.gmra.mrb[0].mxu0 %v425
        %v1542 = vpop.f32.mrb[0].mxu0
        %v1543 = vadd.f32 %v1469, %v1542
        %v1544 = vpop.f32.mrb[0].mxu0
        %1545 = vdwg.mxu0
        %s1546 = scalar_lea.vmem %s4, 48
        %v1547 = vld [vmem:[%s1546] sm:$0xff]
        %v1548 = vld [vmem:[%s1546 + $0x8] sm:$0xff]
        %v1549 = vld [vmem:[%s1546 + $0x10] sm:$0xff]
        %s1550 = scalar_lea.vmem %s5, 2
        %v1551 = vld [vmem:[%s1550] sm:$0x1]
        %v1553 = vlaneseq
        %v1554 = vshrl.u32 %v1553, 7
        %v1555 = vsub.s32 0, %v1554
        %v1556 = vrot.slane %v1551, %v1555
        %1558 = vmatprep.subr.mxu0 0.0
        %1559 = vmatpush1.msra.mxu0 %v1547
        %1560 = vmatprep.subr.mxu0 0.0
        %1561 = vmatpush1.msra.mxu0 %v1548
        %1562 = vmatprep.subr.mxu0 0.0
        %1563 = vmatpush1.msra.mxu0 %v1549
        %1564 = vmatprep.subr.mxu0 0.0
        %1565 = vmatpush1.msra.mxu0 0.0
        %1566 = vmatprep.subr.mxu0 0.0
        %1567 = vmatpush1.msra.mxu0 0.0
        %1568 = vmatprep.subr.mxu0 0.0
        %1569 = vmatpush1.msra.mxu0 0.0
        %1570 = vmatprep.subr.mxu0 0.0
        %1571 = vmatpush1.msra.mxu0 0.0
        %1572 = vmatprep.subr.mxu0 0.0
        %1573 = vmatpush1.msra.mxu0 0.0
        %1574 = vmatprep.subr.mxu0 0.0
        %1575 = vmatpush1.msra.mxu0 0.0
        %1576 = vmatprep.subr.mxu0 0.0
        %1577 = vmatpush1.msra.mxu0 0.0
        %1578 = vmatprep.subr.mxu0 0.0
        %1579 = vmatpush1.msra.mxu0 0.0
        %1580 = vmatprep.subr.mxu0 0.0
        %1581 = vmatpush1.msra.mxu0 0.0
        %1582 = vmatprep.subr.mxu0 0.0
        %1583 = vmatpush1.msra.mxu0 0.0
        %1584 = vmatprep.subr.mxu0 0.0
        %1585 = vmatpush1.msra.mxu0 0.0
        %1586 = vmatprep.subr.mxu0 0.0
        %1587 = vmatpush1.msra.mxu0 0.0
        %1588 = vmatprep.subr.mxu0 0.0
        %1589 = vmatpush1.msra.mxu0 0.0
        %1590 = vmatprep.subr.mxu0 0.0
        %1591 = vmatpush1.msra.mxu0 0.0
        %1592 = vmatprep.subr.mxu0 0.0
        %1593 = vmatpush1.msra.mxu0 0.0
        %1594 = vmatprep.subr.mxu0 0.0
        %1595 = vmatpush1.msra.mxu0 0.0
        %1596 = vmatprep.subr.mxu0 0.0
        %1597 = vmatpush1.msra.mxu0 0.0
        %1598 = vmatprep.subr.mxu0 0.0
        %1599 = vmatpush1.msra.mxu0 0.0
        %1600 = vmatprep.subr.mxu0 0.0
        %1601 = vmatpush1.msra.mxu0 0.0
        %1602 = vmatprep.subr.mxu0 0.0
        %1603 = vmatpush1.msra.mxu0 0.0
        %1604 = vmatprep.subr.mxu0 0.0
        %1605 = vmatpush1.msra.mxu0 0.0
        %1606 = vmatprep.subr.mxu0 0.0
        %1607 = vmatpush1.msra.mxu0 0.0
        %1608 = vmatprep.subr.mxu0 0.0
        %1609 = vmatpush1.msra.mxu0 0.0
        %1610 = vmatprep.subr.mxu0 0.0
        %1611 = vmatpush1.msra.mxu0 0.0
        %1612 = vmatprep.subr.mxu0 0.0
        %1613 = vmatpush1.msra.mxu0 0.0
        %1614 = vmatprep.subr.mxu0 0.0
        %1615 = vmatpush1.msra.mxu0 0.0
        %1616 = vmatprep.subr.mxu0 0.0
        %1617 = vmatpush1.msra.mxu0 0.0
        %1618 = vmatprep.subr.mxu0 0.0
        %1619 = vmatpush1.msra.mxu0 0.0
        %1620 = vmatprep.subr.mxu0 0.0
        %1621 = vmatpush1.msra.mxu0 0.0
        %1622 = vmatprep.mubr.f32.mxu0 0.0
        %1623 = vmatmul.mubr.f32.gmra.mrb[0].mxu0 %v514
        %v1624 = vpop.f32.mrb[0].mxu0
        %v1625 = vadd.f32 %v1556, %v1624
        %v1626 = vpop.f32.mrb[0].mxu0
        %1627 = vdwg.mxu0
        %s1628 = scalar_lea.vmem %s6, 48
        %v1629 = vld [vmem:[%s1628] sm:$0xff]
        %v1630 = vld [vmem:[%s1628 + $0x8] sm:$0xff]
        %v1631 = vld [vmem:[%s1628 + $0x10] sm:$0xff]
        %s1632 = scalar_lea.vmem %s7, 2
        %v1633 = vld [vmem:[%s1632] sm:$0x1]
        %v1635 = vlaneseq
        %v1636 = vshrl.u32 %v1635, 7
        %v1637 = vsub.s32 0, %v1636
        %v1638 = vrot.slane %v1633, %v1637
        %1640 = vmatprep.subr.mxu0 0.0
        %1641 = vmatpush1.msra.mxu0 %v1629
        %1642 = vmatprep.subr.mxu0 0.0
        %1643 = vmatpush1.msra.mxu0 %v1630
        %1644 = vmatprep.subr.mxu0 0.0
        %1645 = vmatpush1.msra.mxu0 %v1631
        %1646 = vmatprep.subr.mxu0 0.0
        %1647 = vmatpush1.msra.mxu0 0.0
        %1648 = vmatprep.subr.mxu0 0.0
        %1649 = vmatpush1.msra.mxu0 0.0
        %1650 = vmatprep.subr.mxu0 0.0
        %1651 = vmatpush1.msra.mxu0 0.0
        %1652 = vmatprep.subr.mxu0 0.0
        %1653 = vmatpush1.msra.mxu0 0.0
        %1654 = vmatprep.subr.mxu0 0.0
        %1655 = vmatpush1.msra.mxu0 0.0
        %1656 = vmatprep.subr.mxu0 0.0
        %1657 = vmatpush1.msra.mxu0 0.0
        %1658 = vmatprep.subr.mxu0 0.0
        %1659 = vmatpush1.msra.mxu0 0.0
        %1660 = vmatprep.subr.mxu0 0.0
        %1661 = vmatpush1.msra.mxu0 0.0
        %1662 = vmatprep.subr.mxu0 0.0
        %1663 = vmatpush1.msra.mxu0 0.0
        %1664 = vmatprep.subr.mxu0 0.0
        %1665 = vmatpush1.msra.mxu0 0.0
        %1666 = vmatprep.subr.mxu0 0.0
        %1667 = vmatpush1.msra.mxu0 0.0
        %1668 = vmatprep.subr.mxu0 0.0
        %1669 = vmatpush1.msra.mxu0 0.0
        %1670 = vmatprep.subr.mxu0 0.0
        %1671 = vmatpush1.msra.mxu0 0.0
        %1672 = vmatprep.subr.mxu0 0.0
        %1673 = vmatpush1.msra.mxu0 0.0
        %1674 = vmatprep.subr.mxu0 0.0
        %1675 = vmatpush1.msra.mxu0 0.0
        %1676 = vmatprep.subr.mxu0 0.0
        %1677 = vmatpush1.msra.mxu0 0.0
        %1678 = vmatprep.subr.mxu0 0.0
        %1679 = vmatpush1.msra.mxu0 0.0
        %1680 = vmatprep.subr.mxu0 0.0
        %1681 = vmatpush1.msra.mxu0 0.0
        %1682 = vmatprep.subr.mxu0 0.0
        %1683 = vmatpush1.msra.mxu0 0.0
        %1684 = vmatprep.subr.mxu0 0.0
        %1685 = vmatpush1.msra.mxu0 0.0
        %1686 = vmatprep.subr.mxu0 0.0
        %1687 = vmatpush1.msra.mxu0 0.0
        %1688 = vmatprep.subr.mxu0 0.0
        %1689 = vmatpush1.msra.mxu0 0.0
        %1690 = vmatprep.subr.mxu0 0.0
        %1691 = vmatpush1.msra.mxu0 0.0
        %1692 = vmatprep.subr.mxu0 0.0
        %1693 = vmatpush1.msra.mxu0 0.0
        %1694 = vmatprep.subr.mxu0 0.0
        %1695 = vmatpush1.msra.mxu0 0.0
        %1696 = vmatprep.subr.mxu0 0.0
        %1697 = vmatpush1.msra.mxu0 0.0
        %1698 = vmatprep.subr.mxu0 0.0
        %1699 = vmatpush1.msra.mxu0 0.0
        %1700 = vmatprep.subr.mxu0 0.0
        %1701 = vmatpush1.msra.mxu0 0.0
        %1702 = vmatprep.subr.mxu0 0.0
        %1703 = vmatpush1.msra.mxu0 0.0
        %1704 = vmatprep.mubr.f32.mxu0 0.0
        %1705 = vmatmul.mubr.f32.gmra.mrb[0].mxu0 %v514
        %v1706 = vpop.f32.mrb[0].mxu0
        %v1707 = vadd.f32 %v1638, %v1706
        %v1708 = vpop.f32.mrb[0].mxu0
        %1709 = vdwg.mxu0
        %v1711 = vsel %vm666, %v1538, 0
        %v1714 = vsel %vm666, %v1543, 0
        %v1717 = vsel %vm666, %v1625, 0
        %1719 = vmatprep.subr.mxu0 0.0
        %1720 = vmatpush1.xpose.msra.mxu0 %v1717
        %1721 = vmatprep.subr.mxu0 0.0
        %1722 = vmatpush1.xpose.msra.mxu0 0.0
        %1723 = vmatprep.subr.mxu0 0.0
        %1724 = vmatpush1.xpose.msra.mxu0 0.0
        %1725 = vmatprep.subr.mxu0 0.0
        %1726 = vmatpush1.xpose.msra.mxu0 0.0
        %1727 = vmatprep.subr.mxu0 0.0
        %1728 = vmatpush1.xpose.msra.mxu0 0.0
        %1729 = vmatprep.subr.mxu0 0.0
        %1730 = vmatpush1.xpose.msra.mxu0 0.0
        %1731 = vmatprep.subr.mxu0 0.0
        %1732 = vmatpush1.xpose.msra.mxu0 0.0
        %1733 = vmatprep.subr.mxu0 0.0
        %1734 = vmatpush1.xpose.msra.mxu0 0.0
        %1735 = vmatprep.subr.mxu0 0.0
        %1736 = vmatpush1.xpose.msra.mxu0 0.0
        %1737 = vmatprep.subr.mxu0 0.0
        %1738 = vmatpush1.xpose.msra.mxu0 0.0
        %1739 = vmatprep.subr.mxu0 0.0
        %1740 = vmatpush1.xpose.msra.mxu0 0.0
        %1741 = vmatprep.subr.mxu0 0.0
        %1742 = vmatpush1.xpose.msra.mxu0 0.0
        %1743 = vmatprep.subr.mxu0 0.0
        %1744 = vmatpush1.xpose.msra.mxu0 0.0
        %1745 = vmatprep.subr.mxu0 0.0
        %1746 = vmatpush1.xpose.msra.mxu0 0.0
        %1747 = vmatprep.subr.mxu0 0.0
        %1748 = vmatpush1.xpose.msra.mxu0 0.0
        %1749 = vmatprep.subr.mxu0 0.0
        %1750 = vmatpush1.xpose.msra.mxu0 0.0
        %1751 = vmatprep.subr.mxu0 0.0
        %1752 = vmatpush1.xpose.msra.mxu0 0.0
        %1753 = vmatprep.subr.mxu0 0.0
        %1754 = vmatpush1.xpose.msra.mxu0 0.0
        %1755 = vmatprep.subr.mxu0 0.0
        %1756 = vmatpush1.xpose.msra.mxu0 0.0
        %1757 = vmatprep.subr.mxu0 0.0
        %1758 = vmatpush1.xpose.msra.mxu0 0.0
        %1759 = vmatprep.subr.mxu0 0.0
        %1760 = vmatpush1.xpose.msra.mxu0 0.0
        %1761 = vmatprep.subr.mxu0 0.0
        %1762 = vmatpush1.xpose.msra.mxu0 0.0
        %1763 = vmatprep.subr.mxu0 0.0
        %1764 = vmatpush1.xpose.msra.mxu0 0.0
        %1765 = vmatprep.subr.mxu0 0.0
        %1766 = vmatpush1.xpose.msra.mxu0 0.0
        %1767 = vmatprep.subr.mxu0 0.0
        %1768 = vmatpush1.xpose.msra.mxu0 0.0
        %1769 = vmatprep.subr.mxu0 0.0
        %1770 = vmatpush1.xpose.msra.mxu0 0.0
        %1771 = vmatprep.subr.mxu0 0.0
        %1772 = vmatpush1.xpose.msra.mxu0 0.0
        %1773 = vmatprep.subr.mxu0 0.0
        %1774 = vmatpush1.xpose.msra.mxu0 0.0
        %1775 = vmatprep.subr.mxu0 0.0
        %1776 = vmatpush1.xpose.msra.mxu0 0.0
        %1777 = vmatprep.subr.mxu0 0.0
        %1778 = vmatpush1.xpose.msra.mxu0 0.0
        %1779 = vmatprep.subr.mxu0 0.0
        %1780 = vmatpush1.xpose.msra.mxu0 0.0
        %1781 = vmatprep.subr.mxu0 0.0
        %1782 = vmatpush1.xpose.msra.mxu0 0.0
        %1783 = vmatprep.mubr.f32.mxu0 0.0
        %1784 = vmatmul.mubr.f32.gmra.mrb[0].mxu0 %v1711
        %v1785 = vpop.f32.mrb[0].mxu0
        %v1786 = vadd.f32 0.0, %v1785
        %v1787 = vpop.f32.mrb[0].mxu0
        %1788 = vmatprep.mubr.f32.mxu0 0.0
        %1789 = vmatmul.mubr.f32.gmra.mrb[0].mxu0 %v1714
        %v1790 = vpop.f32.mrb[0].mxu0
        %v1791 = vadd.f32 0.0, %v1790
        %v1792 = vpop.f32.mrb[0].mxu0
        %1793 = vdwg.mxu0
        %v1794 = vsel %vm666, %v1786, -inf
        %1795 = vmax.xlane.f32.xlu0 %v1794
        %v1796 = vpop.xlane.xlu0 %1795
        %v1797 = vsel %vm666, %v1791, -inf
        %1798 = vmax.xlane.f32.xlu0 %v1797
        %v1799 = vpop.xlane.xlu0 %1798
        %v1800 = vsub.f32 %v1786, %v1796
        %v1801 = vsub.f32 %v1791, %v1799
        %v1802 = vmul.f32 %v1800, 1.442695
        %v1803 = vpow.pop %v1802
        %v1804 = vmul.f32 %v1801, 1.442695
        %v1805 = vpow.pop %v1804
        %v1806 = vsel %vm666, %v1803, 0.0
        %1807 = vadd.xlane.f32.xlu0 %v1806
        %v1808 = vpop.xlane.xlu0 %1807
        %v1809 = vsel %vm666, %v1805, 0.0
        %1810 = vadd.xlane.f32.xlu0 %v1809
        %v1811 = vpop.xlane.xlu0 %1810
        %v1812 = vrcp.pop %v1808
        %v1813 = vrcp.pop %v1811
        %v1814 = vmul.f32 %v1803, %v1812
        %v1815 = vmul.f32 %v1805, %v1813
        %v1817 = vsel %vm666, %v1814, 0
        %v1820 = vsel %vm666, %v1815, 0
        %1822 = vmatprep.subr.mxu0 0.0
        %1823 = vmatpush1.msra.mxu0 %v1707
        %1824 = vmatprep.subr.mxu0 0.0
        %1825 = vmatpush1.msra.mxu0 0.0
        %1826 = vmatprep.subr.mxu0 0.0
        %1827 = vmatpush1.msra.mxu0 0.0
        %1828 = vmatprep.subr.mxu0 0.0
        %1829 = vmatpush1.msra.mxu0 0.0
        %1830 = vmatprep.subr.mxu0 0.0
        %1831 = vmatpush1.msra.mxu0 0.0
        %1832 = vmatprep.subr.mxu0 0.0
        %1833 = vmatpush1.msra.mxu0 0.0
        %1834 = vmatprep.subr.mxu0 0.0
        %1835 = vmatpush1.msra.mxu0 0.0
        %1836 = vmatprep.subr.mxu0 0.0
        %1837 = vmatpush1.msra.mxu0 0.0
        %1838 = vmatprep.subr.mxu0 0.0
        %1839 = vmatpush1.msra.mxu0 0.0
        %1840 = vmatprep.subr.mxu0 0.0
        %1841 = vmatpush1.msra.mxu0 0.0
        %1842 = vmatprep.subr.mxu0 0.0
        %1843 = vmatpush1.msra.mxu0 0.0
        %1844 = vmatprep.subr.mxu0 0.0
        %1845 = vmatpush1.msra.mxu0 0.0
        %1846 = vmatprep.subr.mxu0 0.0
        %1847 = vmatpush1.msra.mxu0 0.0
        %1848 = vmatprep.subr.mxu0 0.0
        %1849 = vmatpush1.msra.mxu0 0.0
        %1850 = vmatprep.subr.mxu0 0.0
        %1851 = vmatpush1.msra.mxu0 0.0
        %1852 = vmatprep.subr.mxu0 0.0
        %1853 = vmatpush1.msra.mxu0 0.0
        %1854 = vmatprep.subr.mxu0 0.0
        %1855 = vmatpush1.msra.mxu0 0.0
        %1856 = vmatprep.subr.mxu0 0.0
        %1857 = vmatpush1.msra.mxu0 0.0
        %1858 = vmatprep.subr.mxu0 0.0
        %1859 = vmatpush1.msra.mxu0 0.0
        %1860 = vmatprep.subr.mxu0 0.0
        %1861 = vmatpush1.msra.mxu0 0.0
        %1862 = vmatprep.subr.mxu0 0.0
        %1863 = vmatpush1.msra.mxu0 0.0
        %1864 = vmatprep.subr.mxu0 0.0
        %1865 = vmatpush1.msra.mxu0 0.0
        %1866 = vmatprep.subr.mxu0 0.0
        %1867 = vmatpush1.msra.mxu0 0.0
        %1868 = vmatprep.subr.mxu0 0.0
        %1869 = vmatpush1.msra.mxu0 0.0
        %1870 = vmatprep.subr.mxu0 0.0
        %1871 = vmatpush1.msra.mxu0 0.0
        %1872 = vmatprep.subr.mxu0 0.0
        %1873 = vmatpush1.msra.mxu0 0.0
        %1874 = vmatprep.subr.mxu0 0.0
        %1875 = vmatpush1.msra.mxu0 0.0
        %1876 = vmatprep.subr.mxu0 0.0
        %1877 = vmatpush1.msra.mxu0 0.0
        %1878 = vmatprep.subr.mxu0 0.0
        %1879 = vmatpush1.msra.mxu0 0.0
        %1880 = vmatprep.subr.mxu0 0.0
        %1881 = vmatpush1.msra.mxu0 0.0
        %1882 = vmatprep.subr.mxu0 0.0
        %1883 = vmatpush1.msra.mxu0 0.0
        %1884 = vmatprep.subr.mxu0 0.0
        %1885 = vmatpush1.msra.mxu0 0.0
        %1886 = vmatprep.mubr.f32.mxu0 0.0
        %1887 = vmatmul.mubr.f32.gmra.mrb[0].mxu0 %v1817
        %v1888 = vpop.f32.mrb[0].mxu0
        %v1889 = vadd.f32 0.0, %v1888
        %v1890 = vpop.f32.mrb[0].mxu0
        %1891 = vmatprep.mubr.f32.mxu0 0.0
        %1892 = vmatmul.mubr.f32.gmra.mrb[0].mxu0 %v1820
        %v1893 = vpop.f32.mrb[0].mxu0
        %v1894 = vadd.f32 0.0, %v1893
        %v1895 = vpop.f32.mrb[0].mxu0
        %1896 = vdwg.mxu0
        %s1897 = scalar_lea.vmem %s8, 16
        %v1898 = vld [vmem:[%s1897] sm:$0xff]
        %v1900 = vsel %vm666, %v1889, 0
        %v1903 = vsel %vm666, %v1894, 0
        %1905 = vmatprep.subr.mxu0 0.0
        %1906 = vmatpush1.msra.mxu0 %v1898
        %1907 = vmatprep.subr.mxu0 0.0
        %1908 = vmatpush1.msra.mxu0 0.0
        %1909 = vmatprep.subr.mxu0 0.0
        %1910 = vmatpush1.msra.mxu0 0.0
        %1911 = vmatprep.subr.mxu0 0.0
        %1912 = vmatpush1.msra.mxu0 0.0
        %1913 = vmatprep.subr.mxu0 0.0
        %1914 = vmatpush1.msra.mxu0 0.0
        %1915 = vmatprep.subr.mxu0 0.0
        %1916 = vmatpush1.msra.mxu0 0.0
        %1917 = vmatprep.subr.mxu0 0.0
        %1918 = vmatpush1.msra.mxu0 0.0
        %1919 = vmatprep.subr.mxu0 0.0
        %1920 = vmatpush1.msra.mxu0 0.0
        %1921 = vmatprep.subr.mxu0 0.0
        %1922 = vmatpush1.msra.mxu0 0.0
        %1923 = vmatprep.subr.mxu0 0.0
        %1924 = vmatpush1.msra.mxu0 0.0
        %1925 = vmatprep.subr.mxu0 0.0
        %1926 = vmatpush1.msra.mxu0 0.0
        %1927 = vmatprep.subr.mxu0 0.0
        %1928 = vmatpush1.msra.mxu0 0.0
        %1929 = vmatprep.subr.mxu0 0.0
        %1930 = vmatpush1.msra.mxu0 0.0
        %1931 = vmatprep.subr.mxu0 0.0
        %1932 = vmatpush1.msra.mxu0 0.0
        %1933 = vmatprep.subr.mxu0 0.0
        %1934 = vmatpush1.msra.mxu0 0.0
        %1935 = vmatprep.subr.mxu0 0.0
        %1936 = vmatpush1.msra.mxu0 0.0
        %1937 = vmatprep.subr.mxu0 0.0
        %1938 = vmatpush1.msra.mxu0 0.0
        %1939 = vmatprep.subr.mxu0 0.0
        %1940 = vmatpush1.msra.mxu0 0.0
        %1941 = vmatprep.subr.mxu0 0.0
        %1942 = vmatpush1.msra.mxu0 0.0
        %1943 = vmatprep.subr.mxu0 0.0
        %1944 = vmatpush1.msra.mxu0 0.0
        %1945 = vmatprep.subr.mxu0 0.0
        %1946 = vmatpush1.msra.mxu0 0.0
        %1947 = vmatprep.subr.mxu0 0.0
        %1948 = vmatpush1.msra.mxu0 0.0
        %1949 = vmatprep.subr.mxu0 0.0
        %1950 = vmatpush1.msra.mxu0 0.0
        %1951 = vmatprep.subr.mxu0 0.0
        %1952 = vmatpush1.msra.mxu0 0.0
        %1953 = vmatprep.subr.mxu0 0.0
        %1954 = vmatpush1.msra.mxu0 0.0
        %1955 = vmatprep.subr.mxu0 0.0
        %1956 = vmatpush1.msra.mxu0 0.0
        %1957 = vmatprep.subr.mxu0 0.0
        %1958 = vmatpush1.msra.mxu0 0.0
        %1959 = vmatprep.subr.mxu0 0.0
        %1960 = vmatpush1.msra.mxu0 0.0
        %1961 = vmatprep.subr.mxu0 0.0
        %1962 = vmatpush1.msra.mxu0 0.0
        %1963 = vmatprep.subr.mxu0 0.0
        %1964 = vmatpush1.msra.mxu0 0.0
        %1965 = vmatprep.subr.mxu0 0.0
        %1966 = vmatpush1.msra.mxu0 0.0
        %1967 = vmatprep.subr.mxu0 0.0
        %1968 = vmatpush1.msra.mxu0 0.0
        %1969 = vmatprep.mubr.f32.mxu0 0.0
        %1970 = vmatmul.mubr.f32.gmra.mrb[0].mxu0 %v1900
        %v1971 = vpop.f32.mrb[0].mxu0
        %v1972 = vadd.f32 0.0, %v1971
        %v1973 = vpop.f32.mrb[0].mxu0
        %1974 = vmatprep.mubr.f32.mxu0 0.0
        %1975 = vmatmul.mubr.f32.gmra.mrb[0].mxu0 %v1903
        %v1976 = vpop.f32.mrb[0].mxu0
        %v1977 = vadd.f32 0.0, %v1976
        %v1978 = vpop.f32.mrb[0].mxu0
        %1979 = vdwg.mxu0
        %v1980 = vadd.f32 %v1450, %v1972
        %v1981 = vadd.f32 %v1455, %v1977
        %s1982 = scalar_lea.vmem %s2, 96
        %v1983 = vld [vmem:[%s1982] sm:$0xff]
        %v1984 = vld [vmem:[%s1982 + $0x8] sm:$0xff]
        %v1985 = vld [vmem:[%s1982 + $0x10] sm:$0xff]
        %v1986 = vld [vmem:[%s1982 + $0x18] sm:$0xff]
        %s1987 = scalar_lea.vmem %s3, 3
        %v1988 = vld [vmem:[%s1987] sm:$0x1]
        %v1990 = vlaneseq
        %v1991 = vshrl.u32 %v1990, 7
        %v1992 = vsub.s32 0, %v1991
        %v1993 = vrot.slane %v1988, %v1992
        %1995 = vmatprep.subr.mxu0 0.0
        %1996 = vmatpush1.msra.mxu0 %v1983
        %1997 = vmatprep.subr.mxu0 0.0
        %1998 = vmatpush1.msra.mxu0 %v1984
        %1999 = vmatprep.subr.mxu0 0.0
        %2000 = vmatpush1.msra.mxu0 %v1985
        %2001 = vmatprep.subr.mxu0 0.0
        %2002 = vmatpush1.msra.mxu0 %v1986
        %2003 = vmatprep.subr.mxu0 0.0
        %2004 = vmatpush1.msra.mxu0 0.0
        %2005 = vmatprep.subr.mxu0 0.0
        %2006 = vmatpush1.msra.mxu0 0.0
        %2007 = vmatprep.subr.mxu0 0.0
        %2008 = vmatpush1.msra.mxu0 0.0
        %2009 = vmatprep.subr.mxu0 0.0
        %2010 = vmatpush1.msra.mxu0 0.0
        %2011 = vmatprep.subr.mxu0 0.0
        %2012 = vmatpush1.msra.mxu0 0.0
        %2013 = vmatprep.subr.mxu0 0.0
        %2014 = vmatpush1.msra.mxu0 0.0
        %2015 = vmatprep.subr.mxu0 0.0
        %2016 = vmatpush1.msra.mxu0 0.0
        %2017 = vmatprep.subr.mxu0 0.0
        %2018 = vmatpush1.msra.mxu0 0.0
        %2019 = vmatprep.subr.mxu0 0.0
        %2020 = vmatpush1.msra.mxu0 0.0
        %2021 = vmatprep.subr.mxu0 0.0
        %2022 = vmatpush1.msra.mxu0 0.0
        %2023 = vmatprep.subr.mxu0 0.0
        %2024 = vmatpush1.msra.mxu0 0.0
        %2025 = vmatprep.subr.mxu0 0.0
        %2026 = vmatpush1.msra.mxu0 0.0
        %2027 = vmatprep.subr.mxu0 0.0
        %2028 = vmatpush1.msra.mxu0 0.0
        %2029 = vmatprep.subr.mxu0 0.0
        %2030 = vmatpush1.msra.mxu0 0.0
        %2031 = vmatprep.subr.mxu0 0.0
        %2032 = vmatpush1.msra.mxu0 0.0
        %2033 = vmatprep.subr.mxu0 0.0
        %2034 = vmatpush1.msra.mxu0 0.0
        %2035 = vmatprep.subr.mxu0 0.0
        %2036 = vmatpush1.msra.mxu0 0.0
        %2037 = vmatprep.subr.mxu0 0.0
        %2038 = vmatpush1.msra.mxu0 0.0
        %2039 = vmatprep.subr.mxu0 0.0
        %2040 = vmatpush1.msra.mxu0 0.0
        %2041 = vmatprep.subr.mxu0 0.0
        %2042 = vmatpush1.msra.mxu0 0.0
        %2043 = vmatprep.subr.mxu0 0.0
        %2044 = vmatpush1.msra.mxu0 0.0
        %2045 = vmatprep.subr.mxu0 0.0
        %2046 = vmatpush1.msra.mxu0 0.0
        %2047 = vmatprep.subr.mxu0 0.0
        %2048 = vmatpush1.msra.mxu0 0.0
        %2049 = vmatprep.subr.mxu0 0.0
        %2050 = vmatpush1.msra.mxu0 0.0
        %2051 = vmatprep.subr.mxu0 0.0
        %2052 = vmatpush1.msra.mxu0 0.0
        %2053 = vmatprep.subr.mxu0 0.0
        %2054 = vmatpush1.msra.mxu0 0.0
        %2055 = vmatprep.subr.mxu0 0.0
        %2056 = vmatpush1.msra.mxu0 0.0
        %2057 = vmatprep.subr.mxu0 0.0
        %2058 = vmatpush1.msra.mxu0 0.0
        %2059 = vmatprep.mubr.f32.mxu0 0.0
        %2060 = vmatmul.mubr.f32.gmra.mrb[0].mxu0 %v422
        %v2061 = vpop.f32.mrb[0].mxu0
        %v2062 = vadd.f32 %v1993, %v2061
        %v2063 = vpop.f32.mrb[0].mxu0
        %2064 = vmatprep.mubr.f32.mxu0 0.0
        %2065 = vmatmul.mubr.f32.gmra.mrb[0].mxu0 %v425
        %v2066 = vpop.f32.mrb[0].mxu0
        %v2067 = vadd.f32 %v1993, %v2066
        %v2068 = vpop.f32.mrb[0].mxu0
        %2069 = vdwg.mxu0
        %s2070 = scalar_lea.vmem %s4, 72
        %v2071 = vld [vmem:[%s2070] sm:$0xff]
        %v2072 = vld [vmem:[%s2070 + $0x8] sm:$0xff]
        %v2073 = vld [vmem:[%s2070 + $0x10] sm:$0xff]
        %s2074 = scalar_lea.vmem %s5, 3
        %v2075 = vld [vmem:[%s2074] sm:$0x1]
        %v2077 = vlaneseq
        %v2078 = vshrl.u32 %v2077, 7
        %v2079 = vsub.s32 0, %v2078
        %v2080 = vrot.slane %v2075, %v2079
        %2082 = vmatprep.subr.mxu0 0.0
        %2083 = vmatpush1.msra.mxu0 %v2071
        %2084 = vmatprep.subr.mxu0 0.0
        %2085 = vmatpush1.msra.mxu0 %v2072
        %2086 = vmatprep.subr.mxu0 0.0
        %2087 = vmatpush1.msra.mxu0 %v2073
        %2088 = vmatprep.subr.mxu0 0.0
        %2089 = vmatpush1.msra.mxu0 0.0
        %2090 = vmatprep.subr.mxu0 0.0
        %2091 = vmatpush1.msra.mxu0 0.0
        %2092 = vmatprep.subr.mxu0 0.0
        %2093 = vmatpush1.msra.mxu0 0.0
        %2094 = vmatprep.subr.mxu0 0.0
        %2095 = vmatpush1.msra.mxu0 0.0
        %2096 = vmatprep.subr.mxu0 0.0
        %2097 = vmatpush1.msra.mxu0 0.0
        %2098 = vmatprep.subr.mxu0 0.0
        %2099 = vmatpush1.msra.mxu0 0.0
        %2100 = vmatprep.subr.mxu0 0.0
        %2101 = vmatpush1.msra.mxu0 0.0
        %2102 = vmatprep.subr.mxu0 0.0
        %2103 = vmatpush1.msra.mxu0 0.0
        %2104 = vmatprep.subr.mxu0 0.0
        %2105 = vmatpush1.msra.mxu0 0.0
        %2106 = vmatprep.subr.mxu0 0.0
        %2107 = vmatpush1.msra.mxu0 0.0
        %2108 = vmatprep.subr.mxu0 0.0
        %2109 = vmatpush1.msra.mxu0 0.0
        %2110 = vmatprep.subr.mxu0 0.0
        %2111 = vmatpush1.msra.mxu0 0.0
        %2112 = vmatprep.subr.mxu0 0.0
        %2113 = vmatpush1.msra.mxu0 0.0
        %2114 = vmatprep.subr.mxu0 0.0
        %2115 = vmatpush1.msra.mxu0 0.0
        %2116 = vmatprep.subr.mxu0 0.0
        %2117 = vmatpush1.msra.mxu0 0.0
        %2118 = vmatprep.subr.mxu0 0.0
        %2119 = vmatpush1.msra.mxu0 0.0
        %2120 = vmatprep.subr.mxu0 0.0
        %2121 = vmatpush1.msra.mxu0 0.0
        %2122 = vmatprep.subr.mxu0 0.0
        %2123 = vmatpush1.msra.mxu0 0.0
        %2124 = vmatprep.subr.mxu0 0.0
        %2125 = vmatpush1.msra.mxu0 0.0
        %2126 = vmatprep.subr.mxu0 0.0
        %2127 = vmatpush1.msra.mxu0 0.0
        %2128 = vmatprep.subr.mxu0 0.0
        %2129 = vmatpush1.msra.mxu0 0.0
        %2130 = vmatprep.subr.mxu0 0.0
        %2131 = vmatpush1.msra.mxu0 0.0
        %2132 = vmatprep.subr.mxu0 0.0
        %2133 = vmatpush1.msra.mxu0 0.0
        %2134 = vmatprep.subr.mxu0 0.0
        %2135 = vmatpush1.msra.mxu0 0.0
        %2136 = vmatprep.subr.mxu0 0.0
        %2137 = vmatpush1.msra.mxu0 0.0
        %2138 = vmatprep.subr.mxu0 0.0
        %2139 = vmatpush1.msra.mxu0 0.0
        %2140 = vmatprep.subr.mxu0 0.0
        %2141 = vmatpush1.msra.mxu0 0.0
        %2142 = vmatprep.subr.mxu0 0.0
        %2143 = vmatpush1.msra.mxu0 0.0
        %2144 = vmatprep.subr.mxu0 0.0
        %2145 = vmatpush1.msra.mxu0 0.0
        %2146 = vmatprep.mubr.f32.mxu0 0.0
        %2147 = vmatmul.mubr.f32.gmra.mrb[0].mxu0 %v514
        %v2148 = vpop.f32.mrb[0].mxu0
        %v2149 = vadd.f32 %v2080, %v2148
        %v2150 = vpop.f32.mrb[0].mxu0
        %2151 = vdwg.mxu0
        %s2152 = scalar_lea.vmem %s6, 72
        %v2153 = vld [vmem:[%s2152] sm:$0xff]
        %v2154 = vld [vmem:[%s2152 + $0x8] sm:$0xff]
        %v2155 = vld [vmem:[%s2152 + $0x10] sm:$0xff]
        %s2156 = scalar_lea.vmem %s7, 3
        %v2157 = vld [vmem:[%s2156] sm:$0x1]
        %v2159 = vlaneseq
        %v2160 = vshrl.u32 %v2159, 7
        %v2161 = vsub.s32 0, %v2160
        %v2162 = vrot.slane %v2157, %v2161
        %2164 = vmatprep.subr.mxu0 0.0
        %2165 = vmatpush1.msra.mxu0 %v2153
        %2166 = vmatprep.subr.mxu0 0.0
        %2167 = vmatpush1.msra.mxu0 %v2154
        %2168 = vmatprep.subr.mxu0 0.0
        %2169 = vmatpush1.msra.mxu0 %v2155
        %2170 = vmatprep.subr.mxu0 0.0
        %2171 = vmatpush1.msra.mxu0 0.0
        %2172 = vmatprep.subr.mxu0 0.0
        %2173 = vmatpush1.msra.mxu0 0.0
        %2174 = vmatprep.subr.mxu0 0.0
        %2175 = vmatpush1.msra.mxu0 0.0
        %2176 = vmatprep.subr.mxu0 0.0
        %2177 = vmatpush1.msra.mxu0 0.0
        %2178 = vmatprep.subr.mxu0 0.0
        %2179 = vmatpush1.msra.mxu0 0.0
        %2180 = vmatprep.subr.mxu0 0.0
        %2181 = vmatpush1.msra.mxu0 0.0
        %2182 = vmatprep.subr.mxu0 0.0
        %2183 = vmatpush1.msra.mxu0 0.0
        %2184 = vmatprep.subr.mxu0 0.0
        %2185 = vmatpush1.msra.mxu0 0.0
        %2186 = vmatprep.subr.mxu0 0.0
        %2187 = vmatpush1.msra.mxu0 0.0
        %2188 = vmatprep.subr.mxu0 0.0
        %2189 = vmatpush1.msra.mxu0 0.0
        %2190 = vmatprep.subr.mxu0 0.0
        %2191 = vmatpush1.msra.mxu0 0.0
        %2192 = vmatprep.subr.mxu0 0.0
        %2193 = vmatpush1.msra.mxu0 0.0
        %2194 = vmatprep.subr.mxu0 0.0
        %2195 = vmatpush1.msra.mxu0 0.0
        %2196 = vmatprep.subr.mxu0 0.0
        %2197 = vmatpush1.msra.mxu0 0.0
        %2198 = vmatprep.subr.mxu0 0.0
        %2199 = vmatpush1.msra.mxu0 0.0
        %2200 = vmatprep.subr.mxu0 0.0
        %2201 = vmatpush1.msra.mxu0 0.0
        %2202 = vmatprep.subr.mxu0 0.0
        %2203 = vmatpush1.msra.mxu0 0.0
        %2204 = vmatprep.subr.mxu0 0.0
        %2205 = vmatpush1.msra.mxu0 0.0
        %2206 = vmatprep.subr.mxu0 0.0
        %2207 = vmatpush1.msra.mxu0 0.0
        %2208 = vmatprep.subr.mxu0 0.0
        %2209 = vmatpush1.msra.mxu0 0.0
        %2210 = vmatprep.subr.mxu0 0.0
        %2211 = vmatpush1.msra.mxu0 0.0
        %2212 = vmatprep.subr.mxu0 0.0
        %2213 = vmatpush1.msra.mxu0 0.0
        %2214 = vmatprep.subr.mxu0 0.0
        %2215 = vmatpush1.msra.mxu0 0.0
        %2216 = vmatprep.subr.mxu0 0.0
        %2217 = vmatpush1.msra.mxu0 0.0
        %2218 = vmatprep.subr.mxu0 0.0
        %2219 = vmatpush1.msra.mxu0 0.0
        %2220 = vmatprep.subr.mxu0 0.0
        %2221 = vmatpush1.msra.mxu0 0.0
        %2222 = vmatprep.subr.mxu0 0.0
        %2223 = vmatpush1.msra.mxu0 0.0
        %2224 = vmatprep.subr.mxu0 0.0
        %2225 = vmatpush1.msra.mxu0 0.0
        %2226 = vmatprep.subr.mxu0 0.0
        %2227 = vmatpush1.msra.mxu0 0.0
        %2228 = vmatprep.mubr.f32.mxu0 0.0
        %2229 = vmatmul.mubr.f32.gmra.mrb[0].mxu0 %v514
        %v2230 = vpop.f32.mrb[0].mxu0
        %v2231 = vadd.f32 %v2162, %v2230
        %v2232 = vpop.f32.mrb[0].mxu0
        %2233 = vdwg.mxu0
        %v2235 = vsel %vm666, %v2062, 0
        %v2238 = vsel %vm666, %v2067, 0
        %v2241 = vsel %vm666, %v2149, 0
        %2243 = vmatprep.subr.mxu0 0.0
        %2244 = vmatpush1.xpose.msra.mxu0 %v2241
        %2245 = vmatprep.subr.mxu0 0.0
        %2246 = vmatpush1.xpose.msra.mxu0 0.0
        %2247 = vmatprep.subr.mxu0 0.0
        %2248 = vmatpush1.xpose.msra.mxu0 0.0
        %2249 = vmatprep.subr.mxu0 0.0
        %2250 = vmatpush1.xpose.msra.mxu0 0.0
        %2251 = vmatprep.subr.mxu0 0.0
        %2252 = vmatpush1.xpose.msra.mxu0 0.0
        %2253 = vmatprep.subr.mxu0 0.0
        %2254 = vmatpush1.xpose.msra.mxu0 0.0
        %2255 = vmatprep.subr.mxu0 0.0
        %2256 = vmatpush1.xpose.msra.mxu0 0.0
        %2257 = vmatprep.subr.mxu0 0.0
        %2258 = vmatpush1.xpose.msra.mxu0 0.0
        %2259 = vmatprep.subr.mxu0 0.0
        %2260 = vmatpush1.xpose.msra.mxu0 0.0
        %2261 = vmatprep.subr.mxu0 0.0
        %2262 = vmatpush1.xpose.msra.mxu0 0.0
        %2263 = vmatprep.subr.mxu0 0.0
        %2264 = vmatpush1.xpose.msra.mxu0 0.0
        %2265 = vmatprep.subr.mxu0 0.0
        %2266 = vmatpush1.xpose.msra.mxu0 0.0
        %2267 = vmatprep.subr.mxu0 0.0
        %2268 = vmatpush1.xpose.msra.mxu0 0.0
        %2269 = vmatprep.subr.mxu0 0.0
        %2270 = vmatpush1.xpose.msra.mxu0 0.0
        %2271 = vmatprep.subr.mxu0 0.0
        %2272 = vmatpush1.xpose.msra.mxu0 0.0
        %2273 = vmatprep.subr.mxu0 0.0
        %2274 = vmatpush1.xpose.msra.mxu0 0.0
        %2275 = vmatprep.subr.mxu0 0.0
        %2276 = vmatpush1.xpose.msra.mxu0 0.0
        %2277 = vmatprep.subr.mxu0 0.0
        %2278 = vmatpush1.xpose.msra.mxu0 0.0
        %2279 = vmatprep.subr.mxu0 0.0
        %2280 = vmatpush1.xpose.msra.mxu0 0.0
        %2281 = vmatprep.subr.mxu0 0.0
        %2282 = vmatpush1.xpose.msra.mxu0 0.0
        %2283 = vmatprep.subr.mxu0 0.0
        %2284 = vmatpush1.xpose.msra.mxu0 0.0
        %2285 = vmatprep.subr.mxu0 0.0
        %2286 = vmatpush1.xpose.msra.mxu0 0.0
        %2287 = vmatprep.subr.mxu0 0.0
        %2288 = vmatpush1.xpose.msra.mxu0 0.0
        %2289 = vmatprep.subr.mxu0 0.0
        %2290 = vmatpush1.xpose.msra.mxu0 0.0
        %2291 = vmatprep.subr.mxu0 0.0
        %2292 = vmatpush1.xpose.msra.mxu0 0.0
        %2293 = vmatprep.subr.mxu0 0.0
        %2294 = vmatpush1.xpose.msra.mxu0 0.0
        %2295 = vmatprep.subr.mxu0 0.0
        %2296 = vmatpush1.xpose.msra.mxu0 0.0
        %2297 = vmatprep.subr.mxu0 0.0
        %2298 = vmatpush1.xpose.msra.mxu0 0.0
        %2299 = vmatprep.subr.mxu0 0.0
        %2300 = vmatpush1.xpose.msra.mxu0 0.0
        %2301 = vmatprep.subr.mxu0 0.0
        %2302 = vmatpush1.xpose.msra.mxu0 0.0
        %2303 = vmatprep.subr.mxu0 0.0
        %2304 = vmatpush1.xpose.msra.mxu0 0.0
        %2305 = vmatprep.subr.mxu0 0.0
        %2306 = vmatpush1.xpose.msra.mxu0 0.0
        %2307 = vmatprep.mubr.f32.mxu0 0.0
        %2308 = vmatmul.mubr.f32.gmra.mrb[0].mxu0 %v2235
        %v2309 = vpop.f32.mrb[0].mxu0
        %v2310 = vadd.f32 0.0, %v2309
        %v2311 = vpop.f32.mrb[0].mxu0
        %2312 = vmatprep.mubr.f32.mxu0 0.0
        %2313 = vmatmul.mubr.f32.gmra.mrb[0].mxu0 %v2238
        %v2314 = vpop.f32.mrb[0].mxu0
        %v2315 = vadd.f32 0.0, %v2314
        %v2316 = vpop.f32.mrb[0].mxu0
        %2317 = vdwg.mxu0
        %v2318 = vsel %vm666, %v2310, -inf
        %2319 = vmax.xlane.f32.xlu0 %v2318
        %v2320 = vpop.xlane.xlu0 %2319
        %v2321 = vsel %vm666, %v2315, -inf
        %2322 = vmax.xlane.f32.xlu0 %v2321
        %v2323 = vpop.xlane.xlu0 %2322
        %v2324 = vsub.f32 %v2310, %v2320
        %v2325 = vsub.f32 %v2315, %v2323
        %v2326 = vmul.f32 %v2324, 1.442695
        %v2327 = vpow.pop %v2326
        %v2328 = vmul.f32 %v2325, 1.442695
        %v2329 = vpow.pop %v2328
        %v2330 = vsel %vm666, %v2327, 0.0
        %2331 = vadd.xlane.f32.xlu0 %v2330
        %v2332 = vpop.xlane.xlu0 %2331
        %v2333 = vsel %vm666, %v2329, 0.0
        %2334 = vadd.xlane.f32.xlu0 %v2333
        %v2335 = vpop.xlane.xlu0 %2334
        %v2336 = vrcp.pop %v2332
        %v2337 = vrcp.pop %v2335
        %v2338 = vmul.f32 %v2327, %v2336
        %v2339 = vmul.f32 %v2329, %v2337
        %v2341 = vsel %vm666, %v2338, 0
        %v2344 = vsel %vm666, %v2339, 0
        %2346 = vmatprep.subr.mxu0 0.0
        %2347 = vmatpush1.msra.mxu0 %v2231
        %2348 = vmatprep.subr.mxu0 0.0
        %2349 = vmatpush1.msra.mxu0 0.0
        %2350 = vmatprep.subr.mxu0 0.0
        %2351 = vmatpush1.msra.mxu0 0.0
        %2352 = vmatprep.subr.mxu0 0.0
        %2353 = vmatpush1.msra.mxu0 0.0
        %2354 = vmatprep.subr.mxu0 0.0
        %2355 = vmatpush1.msra.mxu0 0.0
        %2356 = vmatprep.subr.mxu0 0.0
        %2357 = vmatpush1.msra.mxu0 0.0
        %2358 = vmatprep.subr.mxu0 0.0
        %2359 = vmatpush1.msra.mxu0 0.0
        %2360 = vmatprep.subr.mxu0 0.0
        %2361 = vmatpush1.msra.mxu0 0.0
        %2362 = vmatprep.subr.mxu0 0.0
        %2363 = vmatpush1.msra.mxu0 0.0
        %2364 = vmatprep.subr.mxu0 0.0
        %2365 = vmatpush1.msra.mxu0 0.0
        %2366 = vmatprep.subr.mxu0 0.0
        %2367 = vmatpush1.msra.mxu0 0.0
        %2368 = vmatprep.subr.mxu0 0.0
        %2369 = vmatpush1.msra.mxu0 0.0
        %2370 = vmatprep.subr.mxu0 0.0
        %2371 = vmatpush1.msra.mxu0 0.0
        %2372 = vmatprep.subr.mxu0 0.0
        %2373 = vmatpush1.msra.mxu0 0.0
        %2374 = vmatprep.subr.mxu0 0.0
        %2375 = vmatpush1.msra.mxu0 0.0
        %2376 = vmatprep.subr.mxu0 0.0
        %2377 = vmatpush1.msra.mxu0 0.0
        %2378 = vmatprep.subr.mxu0 0.0
        %2379 = vmatpush1.msra.mxu0 0.0
        %2380 = vmatprep.subr.mxu0 0.0
        %2381 = vmatpush1.msra.mxu0 0.0
        %2382 = vmatprep.subr.mxu0 0.0
        %2383 = vmatpush1.msra.mxu0 0.0
        %2384 = vmatprep.subr.mxu0 0.0
        %2385 = vmatpush1.msra.mxu0 0.0
        %2386 = vmatprep.subr.mxu0 0.0
        %2387 = vmatpush1.msra.mxu0 0.0
        %2388 = vmatprep.subr.mxu0 0.0
        %2389 = vmatpush1.msra.mxu0 0.0
        %2390 = vmatprep.subr.mxu0 0.0
        %2391 = vmatpush1.msra.mxu0 0.0
        %2392 = vmatprep.subr.mxu0 0.0
        %2393 = vmatpush1.msra.mxu0 0.0
        %2394 = vmatprep.subr.mxu0 0.0
        %2395 = vmatpush1.msra.mxu0 0.0
        %2396 = vmatprep.subr.mxu0 0.0
        %2397 = vmatpush1.msra.mxu0 0.0
        %2398 = vmatprep.subr.mxu0 0.0
        %2399 = vmatpush1.msra.mxu0 0.0
        %2400 = vmatprep.subr.mxu0 0.0
        %2401 = vmatpush1.msra.mxu0 0.0
        %2402 = vmatprep.subr.mxu0 0.0
        %2403 = vmatpush1.msra.mxu0 0.0
        %2404 = vmatprep.subr.mxu0 0.0
        %2405 = vmatpush1.msra.mxu0 0.0
        %2406 = vmatprep.subr.mxu0 0.0
        %2407 = vmatpush1.msra.mxu0 0.0
        %2408 = vmatprep.subr.mxu0 0.0
        %2409 = vmatpush1.msra.mxu0 0.0
        %2410 = vmatprep.mubr.f32.mxu0 0.0
        %2411 = vmatmul.mubr.f32.gmra.mrb[0].mxu0 %v2341
        %v2412 = vpop.f32.mrb[0].mxu0
        %v2413 = vadd.f32 0.0, %v2412
        %v2414 = vpop.f32.mrb[0].mxu0
        %2415 = vmatprep.mubr.f32.mxu0 0.0
        %2416 = vmatmul.mubr.f32.gmra.mrb[0].mxu0 %v2344
        %v2417 = vpop.f32.mrb[0].mxu0
        %v2418 = vadd.f32 0.0, %v2417
        %v2419 = vpop.f32.mrb[0].mxu0
        %2420 = vdwg.mxu0
        %s2421 = scalar_lea.vmem %s8, 24
        %v2422 = vld [vmem:[%s2421] sm:$0xff]
        %v2424 = vsel %vm666, %v2413, 0
        %v2427 = vsel %vm666, %v2418, 0
        %2429 = vmatprep.subr.mxu0 0.0
        %2430 = vmatpush1.msra.mxu0 %v2422
        %2431 = vmatprep.subr.mxu0 0.0
        %2432 = vmatpush1.msra.mxu0 0.0
        %2433 = vmatprep.subr.mxu0 0.0
        %2434 = vmatpush1.msra.mxu0 0.0
        %2435 = vmatprep.subr.mxu0 0.0
        %2436 = vmatpush1.msra.mxu0 0.0
        %2437 = vmatprep.subr.mxu0 0.0
        %2438 = vmatpush1.msra.mxu0 0.0
        %2439 = vmatprep.subr.mxu0 0.0
        %2440 = vmatpush1.msra.mxu0 0.0
        %2441 = vmatprep.subr.mxu0 0.0
        %2442 = vmatpush1.msra.mxu0 0.0
        %2443 = vmatprep.subr.mxu0 0.0
        %2444 = vmatpush1.msra.mxu0 0.0
        %2445 = vmatprep.subr.mxu0 0.0
        %2446 = vmatpush1.msra.mxu0 0.0
        %2447 = vmatprep.subr.mxu0 0.0
        %2448 = vmatpush1.msra.mxu0 0.0
        %2449 = vmatprep.subr.mxu0 0.0
        %2450 = vmatpush1.msra.mxu0 0.0
        %2451 = vmatprep.subr.mxu0 0.0
        %2452 = vmatpush1.msra.mxu0 0.0
        %2453 = vmatprep.subr.mxu0 0.0
        %2454 = vmatpush1.msra.mxu0 0.0
        %2455 = vmatprep.subr.mxu0 0.0
        %2456 = vmatpush1.msra.mxu0 0.0
        %2457 = vmatprep.subr.mxu0 0.0
        %2458 = vmatpush1.msra.mxu0 0.0
        %2459 = vmatprep.subr.mxu0 0.0
        %2460 = vmatpush1.msra.mxu0 0.0
        %2461 = vmatprep.subr.mxu0 0.0
        %2462 = vmatpush1.msra.mxu0 0.0
        %2463 = vmatprep.subr.mxu0 0.0
        %2464 = vmatpush1.msra.mxu0 0.0
        %2465 = vmatprep.subr.mxu0 0.0
        %2466 = vmatpush1.msra.mxu0 0.0
        %2467 = vmatprep.subr.mxu0 0.0
        %2468 = vmatpush1.msra.mxu0 0.0
        %2469 = vmatprep.subr.mxu0 0.0
        %2470 = vmatpush1.msra.mxu0 0.0
        %2471 = vmatprep.subr.mxu0 0.0
        %2472 = vmatpush1.msra.mxu0 0.0
        %2473 = vmatprep.subr.mxu0 0.0
        %2474 = vmatpush1.msra.mxu0 0.0
        %2475 = vmatprep.subr.mxu0 0.0
        %2476 = vmatpush1.msra.mxu0 0.0
        %2477 = vmatprep.subr.mxu0 0.0
        %2478 = vmatpush1.msra.mxu0 0.0
        %2479 = vmatprep.subr.mxu0 0.0
        %2480 = vmatpush1.msra.mxu0 0.0
        %2481 = vmatprep.subr.mxu0 0.0
        %2482 = vmatpush1.msra.mxu0 0.0
        %2483 = vmatprep.subr.mxu0 0.0
        %2484 = vmatpush1.msra.mxu0 0.0
        %2485 = vmatprep.subr.mxu0 0.0
        %2486 = vmatpush1.msra.mxu0 0.0
        %2487 = vmatprep.subr.mxu0 0.0
        %2488 = vmatpush1.msra.mxu0 0.0
        %2489 = vmatprep.subr.mxu0 0.0
        %2490 = vmatpush1.msra.mxu0 0.0
        %2491 = vmatprep.subr.mxu0 0.0
        %2492 = vmatpush1.msra.mxu0 0.0
        %2493 = vmatprep.mubr.f32.mxu0 0.0
        %2494 = vmatmul.mubr.f32.gmra.mrb[0].mxu0 %v2424
        %v2495 = vpop.f32.mrb[0].mxu0
        %v2496 = vadd.f32 0.0, %v2495
        %v2497 = vpop.f32.mrb[0].mxu0
        %2498 = vmatprep.mubr.f32.mxu0 0.0
        %2499 = vmatmul.mubr.f32.gmra.mrb[0].mxu0 %v2427
        %v2500 = vpop.f32.mrb[0].mxu0
        %v2501 = vadd.f32 0.0, %v2500
        %v2502 = vpop.f32.mrb[0].mxu0
        %2503 = vdwg.mxu0
        %v2504 = vadd.f32 %v1980, %v2496
        %v2505 = vadd.f32 %v1981, %v2501
        %v2506 = vld [vmem:[%s9] sm:$0x1]
        %v2508 = vlaneseq
        %v2509 = vshrl.u32 %v2508, 7
        %v2510 = vsub.s32 0, %v2509
        %v2511 = vrot.slane %v2506, %v2510
        %v2513 = vadd.f32 %v2504, %v2511
        %v2514 = vadd.f32 %v2505, %v2511
        %2515 = vst.msk [vmem:[%s390] sm:$0xff] %vm420, %v2513
        %2516 = vst.msk [vmem:[%s390 + $0x8] sm:$0xff] %vm420, %v2514
        %s2517 = sand.u32 %s268, 1
        %s2518 = scalar_lea.sflag [#allocation3], %s2517
        %s2519 = sand.u32 %s268, 1
        %s2520 = smul.addr %s2519, 16
        %s2521 = scalar_lea.vmem [#allocation2], %s2520
        // Predicated region
        $region61: #{tpu_custom_call.1} parent=59 // pred_check
          %p2522 = pneg %p278
        $region62: #{tpu_custom_call.1} parent=59 // pred_check_branch
          %2524 = sbr.rel (%p2522) target = $region64
        $region63: #{tpu_custom_call.1} parent=59 // pred_region
          %s2525 = smul.u32 2, %s29
          %s2527 = ssub.s32 256, 256
          %2528 = vsyncadd %s2518, %s2527
          %s2529 = smul.addr %s28, 2
          %s2530 = sadd.s32 %s2525, %s2529
          %s2531 = smul.addr %s2530, 128
          %s2532 = scalar_lea.hbm %s10, %s2531
          %s2533 = sshll.u32 %s2521, 4
          %s2534 = int_to_ptr.vmem [resolvable:$true] %s2533
          %2539 = dma.vmem_to_hbm [thread:$0]  %s2534, 256, %s2532, %s2518, 128, 128, 8
        $region64: #{tpu_custom_call.1} parent=59 // pred_fallthru
          _
      $region60: #{tpu_custom_call.1} parent=5 // pred_fallthru
        _
      %p2540 = scmp.le.s32.totalorder 2, %s19
      // Predicated region
      $region65: #{tpu_custom_call.1} parent=5 // pred_check
        %p2541 = pneg %p2540
      $region66: #{tpu_custom_call.1} parent=5 // pred_check_branch
        %2543 = sbr.rel (%p2541) target = $region68
      $region67: #{tpu_custom_call.1} parent=5 // pred_region
        %s2544 = ssub.s32 %s19, 2
        // Predicated region
        $region69: #{tpu_custom_call.1} parent=67 // pred_check
          %p2545 = pneg %p284
        $region70: #{tpu_custom_call.1} parent=67 // pred_check_branch
          %2547 = sbr.rel (%p2545) target = $region72
        $region71: #{tpu_custom_call.1} parent=67 // pred_region
          %s2548 = sand.u32 %s269, 1
          %s2549 = scalar_lea.sflag [#allocation3], %s2548
          %s2550 = sand.u32 %s269, 1
          %s2551 = smul.addr %s2550, 16
          %s2552 = scalar_lea.vmem [#allocation2], %s2551
          %2553 = dma.done %s2549, 256
        $region72: #{tpu_custom_call.1} parent=67 // pred_fallthru
          _
      $region68: #{tpu_custom_call.1} parent=5 // pred_fallthru
        _
    $region6: #{tpu_custom_call.1} parent=1 // loop_footer
      %s23 = sadd.s32 1, %s19
    $region7: #{tpu_custom_call.1} parent=1 // loop_footer_branch
      %18 = sbr.rel target = $region3
    $region8: #{tpu_custom_call.1} parent=1 // loop_exit
      _
    %2554 = vsyncpa [#allocation3], 1
    %s2555 = scalar_lea.sflag [#allocation3], 1
    %2556 = vsyncpa %s2555, 1

</llo_original>
